<compile_context>
chip_gen: v7x
topology: tpu7x:2x2x1
jax: 0.10.0
libtpu: 0.0.40
codegen_flags: <defaults>
</compile_context>

<pallas_src>
import jax
import jax.numpy as jnp
from jax import lax
from jax.experimental import pallas as pl
from jax.experimental.pallas import tpu as pltpu


# ------------------------------ in-kernel helpers ------------------------------

def _silu(y):
    # numerically-stable SiLU: sigmoid via tanh (EUP slot, no exp(-y) overflow).
    return y * (0.5 * jnp.tanh(0.5 * y) + 0.5)


def _softplus(y):
    return jnp.logaddexp(y, 0.0)


def _pbc(d, l):
    # single-wrap minimum image; assumes |d| <= 1.5*l per axis (in-box positions).
    d = jnp.where(d > 0.5 * l, d - l, d)
    d = jnp.where(d < -0.5 * l, d + l, d)
    return d


def _mm(a, b):
    return jnp.dot(a, b, preferred_element_type=jnp.float32)


def _mm_t(a, b):
    # Contraction over axis 0 of BOTH operands (transposed-LHS matmul on the MXU).
    # Used for scatter-add / scatter-mean / graph mean-pool so that no R^T, R^T/deg
    # or pooling operator is ever materialized in HBM or VMEM.
    return lax.dot_general(a, b, (((0,), (0,)), ((), ())),
                           preferred_element_type=jnp.float32)


def _bf16(v):
    return v.astype(jnp.bfloat16)


# ------------------------------ fused VAE kernel ------------------------------

def _vae_kernel(
    # graph data / structure (one-hot operators hold 0/1 -> exact in bf16)
    x_ref,      # [N, 1]  f32  node scalar feature
    pos_ref,    # [N, 3]  f32  positions
    rs_ref,     # [2E, N] bf16 stacked gather operator [R ; S] (row = receiver)
    bsel_ref,   # [N, G]  bf16 one-hot(batch)
    deg_ref,    # [N, 1]  f32  receiver in-degree, clamped >= 1 (scatter-mean)
    invc_ref,   # [G, 1]  f32  1 / nodes-per-graph             (graph mean pool)
    eps_ref,    # [G, Z]  f32  reparameterization noise
    l_ref,      # [1, 3]  f32  periodic box
    # packed parameters (static lane slices in-kernel)
    w64_ref,    # [2H, 3H] bf16: enc_edge_w1 | enc_node_w1 | dec_edge_w1
    w32_ref,    # [H, 10H] bf16: enc_edge_w2|enc_node_w2|enc_emb_out|z_mu_w|z_sigma_w|
                #                dec_emb_wz|dec_emb_in|dec_edge_w2|dec_coord_w1|dec_coord_w2(pad)
    vec_ref,    # [1, 17H] f32 : per-feature weight rows & biases (see _pack_params)
    # outputs
    lat_ref,    # [G, 4Z] f32  lane-dense packed [mu | sigma | z | 0]
    diff_ref,   # [N, 3]  f32  pbc(coords - pos)
):
    H = w32_ref.shape[0]
    Z = eps_ref.shape[1]
    E = rs_ref.shape[0] // 2

    def vec(i):
        return vec_ref[:, i * H:(i + 1) * H]

    def w32(i, n=1):
        return w32_ref[:, i * H:(i + n) * H]

    def w64(i):
        return w64_ref[:, i * H:(i + 1) * H]

    l = l_ref[...]
    x = x_ref[...]
    pos = pos_ref[...]
    rs = rs_ref[...]                        # bf16 [2E, N]
    rs_f = rs.astype(jnp.float32)           # exact 0/1; f32 path for geometry only

    # ---- shared edge geometry: computed ONCE for encoder and decoder ----
    pos_rs = _mm(rs_f, pos)                                 # [2E,3] = [pos[row]; pos[col]]
    d = _pbc(pos_rs[:E] - pos_rs[E:], l)                    # [E,3]
    radial = jnp.sum(d * d, axis=-1, keepdims=True)         # [E,1]
    d_norm = d / (jnp.sqrt(radial) + 1.0)                   # normalize=True (exact divide)

    # ================================ encoder ================================
    h0 = x * vec(0) + vec(1)                                # Linear(1,H) as outer product
    hrc = _mm(rs, _bf16(h0))                                # [2E,H] = [h[row]; h[col]]
    e_in = _bf16(jnp.concatenate([hrc[:E], hrc[E:]], -1))   # [E,2H] widened K=64
    m = _silu(_mm(e_in, w64(0)) + radial * vec(2) + vec(3))
    m = _silu(_mm(_bf16(m), w32(0)) + vec(4))               # [E,H] edge messages
    m_agg = _mm_t(rs[:E], _bf16(m))                         # [N,H] scatter-add over receivers
    n_in = _bf16(jnp.concatenate([h0, m_agg], -1))          # [N,2H] widened K=64
    dh = _silu(_mm(n_in, w64(1)) + vec(5))
    dh = _mm(_bf16(dh), w32(1)) + vec(6)
    h = h0 + dh                                             # residual node update
    h_enc = _mm(_bf16(h), w32(2)) + vec(7)                  # [N,Z] EGNN emb_out

    h_g = _mm_t(bsel_ref[...], _bf16(h_enc)) * invc_ref[...]   # [G,Z] graph mean pool
    heads = _mm(_bf16(h_g), w32(3, 2))                      # [G,2Z] = [mu | sigma] pre-bias
    mu = heads[:, :Z] + vec(8)
    sigma = _softplus(heads[:, Z:] + vec(9)) + 1e-6         # scale of Normal(mu, sigma+1e-6)
    z = mu + sigma * eps_ref[...]                           # distribution.rsample()
    lat_ref[...] = jnp.concatenate([mu, sigma, z, jnp.zeros_like(mu)], -1)

    # ================================ decoder ================================
    z_nodes = _mm(bsel_ref[...].astype(jnp.float32), z)     # [N,Z] index_select(z, batch), exact
    hd = x * vec(10) + _mm(_bf16(z_nodes), w32(5)) + vec(11)    # Decoder.emb (concat-free)
    h0d = _mm(_bf16(hd), w32(6)) + vec(12)                  # EGNN emb_in [N,H]
    hrc_d = _mm(rs, _bf16(h0d))                             # [2E,H] gathers (operator reused)
    e_in_d = _bf16(jnp.concatenate([hrc_d[:E], hrc_d[E:]], -1))
    md = _silu(_mm(e_in_d, w64(2)) + radial * vec(13) + vec(14))
    md = _silu(_mm(_bf16(md), w32(7)) + vec(15))            # [E,H]
    c = _silu(_mm(_bf16(md), w32(8)) + vec(16))
    c = jnp.tanh(_mm(_bf16(c), w32_ref[:, 9 * H:9 * H + 1]))    # [E,1] (tanh=True, no bias)
    trans = d_norm * c                                      # [E,3] f32
    agg = _mm_t(rs_f[:E], trans) / deg_ref[...]             # [N,3] scatter-mean (f32, exact)
    # (decoder GCL node-MLP / emb_out are dead code for BasicVAE.forward)
    # coords = pos + agg  ->  coords - pos == agg
    diff_ref[...] = _pbc(agg, l)


# ------------------------------ parameter init/pack ------------------------------

def _dense_init(key, k_in, k_out):
    kw, kb = jax.random.split(key)
    lim = 1.0 / jnp.sqrt(jnp.float32(k_in))
    w = jax.random.uniform(kw, (k_in, k_out), jnp.float32, -lim, lim)
    b = jax.random.uniform(kb, (1, k_out), jnp.float32, -lim, lim)
    return w, b


def init_basic_vae(key, hidden_size=32, latent_size=32):
    """PyTorch-Linear-style params; edge MLP layer-1 weights are stored fused
    ([2H+1, H]) exactly as the torch cat([h_row, h_col, radial]) layer would be."""
    H, Z = hidden_size, latent_size
    ks = jax.random.split(key, 14)
    p = {}
    # encoder EGNN(1 -> H -> Z)
    p["enc_emb_in_w"], p["enc_emb_in_b"] = _dense_init(ks[0], 1, H)
    p["enc_edge_w1"], p["enc_edge_b1"] = _dense_init(ks[1], 2 * H + 1, H)
    p["enc_edge_w2"], p["enc_edge_b2"] = _dense_init(ks[2], H, H)
    p["enc_node_w1"], p["enc_node_b1"] = _dense_init(ks[3], 2 * H, H)
    p["enc_node_w2"], p["enc_node_b2"] = _dense_init(ks[4], H, H)
    p["enc_emb_out_w"], p["enc_emb_out_b"] = _dense_init(ks[5], H, Z)
    # VAE heads
    p["z_mu_w"], p["z_mu_b"] = _dense_init(ks[6], Z, Z)
    p["z_sigma_w"], p["z_sigma_b"] = _dense_init(ks[7], Z, Z)
    # decoder: emb Linear(Z+1, H) (x is the first input feature), EGNN(H -> H) coord path
    p["dec_emb_w"], p["dec_emb_b"] = _dense_init(ks[8], Z + 1, H)
    p["dec_emb_in_w"], p["dec_emb_in_b"] = _dense_init(ks[9], H, H)
    p["dec_edge_w1"], p["dec_edge_b1"] = _dense_init(ks[10], 2 * H + 1, H)
    p["dec_edge_w2"], p["dec_edge_b2"] = _dense_init(ks[11], H, H)
    p["dec_coord_w1"], p["dec_coord_b1"] = _dense_init(ks[12], H, H)
    p["dec_coord_w2"] = _dense_init(ks[13], H, 1)[0]   # final coord layer is bias-free
    return p


def _pack_params(p, hidden_size, latent_size):
    """Pack ~27 tiny params into 3 slabs (fewer DMA descriptors, less (8,128) padding).
    Matmul weights -> bf16 (MXU); biases / per-feature rows stay f32."""
    H, Z = hidden_size, latent_size
    assert H == Z, "slab packing assumes hidden_size == latent_size"
    bf16 = jnp.bfloat16
    w64 = jnp.concatenate([p["enc_edge_w1"][:2 * H],
                           p["enc_node_w1"],
                           p["dec_edge_w1"][:2 * H]], axis=1).astype(bf16)
    coord_w2 = jnp.pad(p["dec_coord_w2"], ((0, 0), (0, H - 1)))   # [H,1] -> [H,H], col 0 used
    w32 = jnp.concatenate([p["enc_edge_w2"], p["enc_node_w2"], p["enc_emb_out_w"],
                           p["z_mu_w"], p["z_sigma_w"],
                           p["dec_emb_w"][1:], p["dec_emb_in_w"],
                           p["dec_edge_w2"], p["dec_coord_w1"],
                           coord_w2], axis=1).astype(bf16)
    vec = jnp.concatenate([p["enc_emb_in_w"], p["enc_emb_in_b"],
                           p["enc_edge_w1"][2 * H:], p["enc_edge_b1"], p["enc_edge_b2"],
                           p["enc_node_b1"], p["enc_node_b2"],
                           p["enc_emb_out_b"], p["z_mu_b"], p["z_sigma_b"],
                           p["dec_emb_w"][:1], p["dec_emb_b"], p["dec_emb_in_b"],
                           p["dec_edge_w1"][2 * H:], p["dec_edge_b1"], p["dec_edge_b2"],
                           p["dec_coord_b1"]], axis=1).astype(jnp.float32)
    return w64, w32, vec


# --------------------------------- model forward ---------------------------------

def basic_vae_forward(params, x, pos, edge_index, batch, num_graphs, l, eps):
    """Fused BasicVAE.forward.  Returns (coord_diff, z, (mu, sigma)); `sigma` is the
    scale of the returned distribution, i.e. softplus(.) + 1e-6."""
    f32, bf16 = jnp.float32, jnp.bfloat16
    N = x.shape[0]
    E = edge_index.shape[1]
    Z = params["z_mu_w"].shape[0]
    H = params["enc_edge_w2"].shape[0]

    row, col = edge_index[0], edge_index[1]
    # Stacked gather operator [R ; S]: 0/1 values are exact in bf16.  The receiver
    # half is reused (transposed-LHS contraction) for scatter-add / scatter-mean,
    # so no R^T / R^T/deg arrays are ever built.
    rs = jnp.concatenate([jax.nn.one_hot(row, N, dtype=bf16),
                          jax.nn.one_hot(col, N, dtype=bf16)], axis=0)      # [2E, N]
    bsel = jax.nn.one_hot(batch, num_graphs, dtype=bf16)                    # [N, G]
    deg = jnp.maximum(jnp.zeros((N,), f32).at[row].add(1.0), 1.0).reshape(N, 1)
    cnt = jnp.maximum(jnp.zeros((num_graphs,), f32).at[batch].add(1.0), 1.0)
    inv_cnt = (1.0 / cnt).reshape(num_graphs, 1)

    w64, w32, vec = _pack_params(params, H, Z)
    x_col = x.reshape(-1, 1).astype(f32)
    pos = pos.astype(f32)
    l_row = l.reshape(1, -1).astype(f32)
    eps = eps.astype(f32)

    args = (x_col, pos, rs, bsel, deg, inv_cnt, eps, l_row, w64, w32, vec)
    out_bytes = num_graphs * 4 * Z * 4 + N * 3 * 4
    in_bytes = sum(int(a.size) * a.dtype.itemsize for a in args)
    # single-block kernel: everything is VMEM-resident; 2x for double-buffering plus
    # headroom for (8,128) padding and in-kernel temporaries.
    vmem_limit = int(min(64 * (1 << 20), 2 * (in_bytes + out_bytes) + (8 << 20)))

    lat, coord_diff = pl.pallas_call(
        _vae_kernel,
        out_shape=(jax.ShapeDtypeStruct((num_graphs, 4 * Z), f32),
                   jax.ShapeDtypeStruct((N, 3), f32)),
        compiler_params=pltpu.CompilerParams(vmem_limit_bytes=vmem_limit),
    )(*args)

    mu = lat[:, 0 * Z:1 * Z]
    sigma = lat[:, 1 * Z:2 * Z]
    z = lat[:, 2 * Z:3 * Z]
    return coord_diff, z, (mu, sigma)


# --------------------------------- demo / smoke test ---------------------------------

if __name__ == "__main__":
    hidden_size, latent_size = 32, 32
    num_graphs, nodes_per_graph = 2, 8
    n_nodes = num_graphs * nodes_per_graph

    key = jax.random.PRNGKey(0)
    k_param, k_x, k_pos, k_eps = jax.random.split(key, 4)

    l = jnp.array([10.0, 10.0, 10.0], jnp.float32)              # periodic box
    x = jax.random.normal(k_x, (n_nodes,), jnp.float32)         # scalar node feature
    pos = jax.random.uniform(k_pos, (n_nodes, 3), jnp.float32) * l
    batch = jnp.repeat(jnp.arange(num_graphs, dtype=jnp.int32), nodes_per_graph)
    eps = jax.random.normal(k_eps, (num_graphs, latent_size), jnp.float32)

    # bidirectional ring edges within each graph (E = 32)
    recv, send = [], []
    for g in range(num_graphs):
        for i in range(nodes_per_graph):
            a = g * nodes_per_graph + i
            b = g * nodes_per_graph + (i + 1) % nodes_per_graph
            recv += [a, b]
            send += [b, a]
    edge_index = jnp.array([recv, send], dtype=jnp.int32)

    params = init_basic_vae(k_param, hidden_size, latent_size)

    fwd = jax.jit(basic_vae_forward, static_argnums=(5,))
    coord_diff, z, (mu, sigma) = fwd(params, x, pos, edge_index, batch,
                                     num_graphs, l, eps)

    jax.block_until_ready((coord_diff, z, mu, sigma))
    assert coord_diff.shape == (n_nodes, 3)
    assert z.shape == (num_graphs, latent_size)
    assert mu.shape == (num_graphs, latent_size)
    assert sigma.shape == (num_graphs, latent_size)
    assert bool(jnp.all(jnp.isfinite(coord_diff)))
    assert bool(jnp.all(jnp.isfinite(z)))
    assert bool(jnp.all(sigma > 0.0))
    print("KERNEL_OK")
</pallas_src>

<mosaic_0001>
module attributes {stable_mosaic.version = 11 : i64} {
  func.func private @main(%arg0: i32) attributes {dimension_semantics = [#tpu.dimension_semantics<core_parallel>], iteration_bounds = array<i64: 2>, tpu.core_type = #tpu.core_type<sc_scalar_subcore>, window_params = []} {
    return
  }
}

module attributes {stable_mosaic.version = 11 : i64} {
  func.func private @main(%arg0: i32) attributes {dimension_semantics = [#tpu.dimension_semantics<core_parallel>], iteration_bounds = array<i64: 2>, tpu.core_type = #tpu.core_type<sc_scalar_subcore>, window_params = []} {
    return
  }
}

module attributes {stable_mosaic.version = 11 : i64} {
  func.func @_vae_kernel(%arg0: memref<16x1xf32, #tpu.memory_space<vmem>>, %arg1: memref<16x3xf32, #tpu.memory_space<vmem>>, %arg2: memref<64x16xbf16, #tpu.memory_space<vmem>>, %arg3: memref<16x2xbf16, #tpu.memory_space<vmem>>, %arg4: memref<16x1xf32, #tpu.memory_space<vmem>>, %arg5: memref<2x1xf32, #tpu.memory_space<vmem>>, %arg6: memref<2x32xf32, #tpu.memory_space<vmem>>, %arg7: memref<1x3xf32, #tpu.memory_space<vmem>>, %arg8: memref<64x96xbf16, #tpu.memory_space<vmem>>, %arg9: memref<32x320xbf16, #tpu.memory_space<vmem>>, %arg10: memref<1x544xf32, #tpu.memory_space<vmem>>, %arg11: memref<2x128xf32, #tpu.memory_space<vmem>>, %arg12: memref<16x3xf32, #tpu.memory_space<vmem>>) attributes {dimension_semantics = [], scalar_prefetch = 0 : i64, scratch_operands = 0 : i64, tpu.core_type = #tpu.core_type<tc>} {
    %c0 = arith.constant 0 : index
    %c0_0 = arith.constant 0 : index
    %0 = vector.load %arg7[%c0, %c0_0] : memref<1x3xf32, #tpu.memory_space<vmem>>, vector<1x3xf32>
    %c0_1 = arith.constant 0 : index
    %c0_2 = arith.constant 0 : index
    %1 = vector.load %arg0[%c0_1, %c0_2] : memref<16x1xf32, #tpu.memory_space<vmem>>, vector<16x1xf32>
    %c0_3 = arith.constant 0 : index
    %c0_4 = arith.constant 0 : index
    %2 = vector.load %arg1[%c0_3, %c0_4] : memref<16x3xf32, #tpu.memory_space<vmem>>, vector<16x3xf32>
    %c0_5 = arith.constant 0 : index
    %c0_6 = arith.constant 0 : index
    %3 = vector.load %arg2[%c0_5, %c0_6] : memref<64x16xbf16, #tpu.memory_space<vmem>>, vector<64x16xbf16>
    %4 = arith.extf %3 : vector<64x16xbf16> to vector<64x16xf32>
    %cst = arith.constant dense<0.000000e+00> : vector<64x3xf32>
    %5 = tpu.matmul %4, %2, %cst {dimension_numbers = #tpu.dot_dimension_numbers<[1], [0], [0], [1], [0, 0, 1, 1], [], []>} : vector<64x16xf32>, vector<16x3xf32>, vector<64x3xf32> -> vector<64x3xf32>
    %6 = vector.extract_strided_slice %5 {offsets = [0, 0], sizes = [32, 3], strides = [1, 1]} : vector<64x3xf32> to vector<32x3xf32>
    %7 = vector.extract_strided_slice %5 {offsets = [32, 0], sizes = [32, 3], strides = [1, 1]} : vector<64x3xf32> to vector<32x3xf32>
    %8 = arith.subf %6, %7 : vector<32x3xf32>
    %cst_7 = arith.constant 5.000000e-01 : f32
    %9 = vector.broadcast %cst_7 : f32 to vector<1x3xf32>
    %10 = arith.mulf %9, %0 : vector<1x3xf32>
    %11 = vector.broadcast %10 : vector<1x3xf32> to vector<32x3xf32>
    %12 = arith.cmpf ogt, %8, %11 : vector<32x3xf32>
    %13 = vector.broadcast %0 : vector<1x3xf32> to vector<32x3xf32>
    %14 = arith.subf %8, %13 : vector<32x3xf32>
    %15 = arith.select %12, %14, %8 : vector<32x3xi1>, vector<32x3xf32>
    %cst_8 = arith.constant -5.000000e-01 : f32
    %16 = vector.broadcast %cst_8 : f32 to vector<1x3xf32>
    %17 = arith.mulf %16, %0 : vector<1x3xf32>
    %18 = vector.broadcast %17 : vector<1x3xf32> to vector<32x3xf32>
    %19 = arith.cmpf olt, %15, %18 : vector<32x3xf32>
    %20 = vector.broadcast %0 : vector<1x3xf32> to vector<32x3xf32>
    %21 = arith.addf %15, %20 : vector<32x3xf32>
    %22 = arith.select %19, %21, %15 : vector<32x3xi1>, vector<32x3xf32>
    %23 = arith.mulf %22, %22 : vector<32x3xf32>
    %cst_9 = arith.constant dense<0.000000e+00> : vector<32xf32>
    %24 = vector.multi_reduction <add>, %23, %cst_9 [1] : vector<32x3xf32> to vector<32xf32>
    %25 = vector.shape_cast %24 : vector<32xf32> to vector<32x1xf32>
    %26 = math.sqrt %25 : vector<32x1xf32>
    %cst_10 = arith.constant 1.000000e+00 : f32
    %27 = vector.broadcast %cst_10 : f32 to vector<32x1xf32>
    %28 = arith.addf %26, %27 : vector<32x1xf32>
    %29 = vector.broadcast %28 : vector<32x1xf32> to vector<32x3xf32>
    %30 = arith.divf %22, %29 : vector<32x3xf32>
    %c0_11 = arith.constant 0 : index
    %c0_12 = arith.constant 0 : index
    %31 = vector.load %arg10[%c0_11, %c0_12] : memref<1x544xf32, #tpu.memory_space<vmem>>, vector<1x32xf32>
    %32 = vector.broadcast %1 : vector<16x1xf32> to vector<16x32xf32>
    %33 = vector.broadcast %31 : vector<1x32xf32> to vector<16x32xf32>
    %34 = arith.mulf %32, %33 : vector<16x32xf32>
    %c0_13 = arith.constant 0 : index
    %c32 = arith.constant 32 : index
    %35 = vector.load %arg10[%c0_13, %c32] : memref<1x544xf32, #tpu.memory_space<vmem>>, vector<1x32xf32>
    %36 = vector.broadcast %35 : vector<1x32xf32> to vector<16x32xf32>
    %37 = arith.addf %34, %36 : vector<16x32xf32>
    %38 = arith.truncf %37 : vector<16x32xf32> to vector<16x32xbf16>
    %cst_14 = arith.constant dense<0.000000e+00> : vector<64x32xf32>
    %39 = tpu.matmul %3, %38, %cst_14 {dimension_numbers = #tpu.dot_dimension_numbers<[1], [0], [0], [1], [0, 0, 1, 1], [], []>} : vector<64x16xbf16>, vector<16x32xbf16>, vector<64x32xf32> -> vector<64x32xf32>
    %40 = vector.extract_strided_slice %39 {offsets = [0, 0], sizes = [32, 32], strides = [1, 1]} : vector<64x32xf32> to vector<32x32xf32>
    %41 = vector.extract_strided_slice %39 {offsets = [32, 0], sizes = [32, 32], strides = [1, 1]} : vector<64x32xf32> to vector<32x32xf32>
    %42 = tpu.concatenate %40, %41 in 1 : vector<32x32xf32>, vector<32x32xf32> -> vector<32x64xf32>
    %43 = arith.truncf %42 : vector<32x64xf32> to vector<32x64xbf16>
    %c0_15 = arith.constant 0 : index
    %c0_16 = arith.constant 0 : index
    %44 = vector.load %arg8[%c0_15, %c0_16] : memref<64x96xbf16, #tpu.memory_space<vmem>>, vector<64x32xbf16>
    %cst_17 = arith.constant dense<0.000000e+00> : vector<32x32xf32>
    %45 = tpu.matmul %43, %44, %cst_17 {dimension_numbers = #tpu.dot_dimension_numbers<[1], [0], [0], [1], [0, 0, 1, 1], [], []>} : vector<32x64xbf16>, vector<64x32xbf16>, vector<32x32xf32> -> vector<32x32xf32>
    %c0_18 = arith.constant 0 : index
    %c64 = arith.constant 64 : index
    %46 = vector.load %arg10[%c0_18, %c64] : memref<1x544xf32, #tpu.memory_space<vmem>>, vector<1x32xf32>
    %47 = vector.broadcast %25 : vector<32x1xf32> to vector<32x32xf32>
    %48 = vector.broadcast %46 : vector<1x32xf32> to vector<32x32xf32>
    %49 = arith.mulf %47, %48 : vector<32x32xf32>
    %50 = arith.addf %45, %49 : vector<32x32xf32>
    %c0_19 = arith.constant 0 : index
    %c96 = arith.constant 96 : index
    %51 = vector.load %arg10[%c0_19, %c96] : memref<1x544xf32, #tpu.memory_space<vmem>>, vector<1x32xf32>
    %52 = vector.broadcast %51 : vector<1x32xf32> to vector<32x32xf32>
    %53 = arith.addf %50, %52 : vector<32x32xf32>
    %cst_20 = arith.constant 5.000000e-01 : f32
    %54 = vector.broadcast %cst_20 : f32 to vector<32x32xf32>
    %55 = arith.mulf %54, %53 : vector<32x32xf32>
    %56 = math.tanh %55 : vector<32x32xf32>
    %cst_21 = arith.constant 5.000000e-01 : f32
    %57 = vector.broadcast %cst_21 : f32 to vector<32x32xf32>
    %58 = arith.mulf %57, %56 : vector<32x32xf32>
    %cst_22 = arith.constant 5.000000e-01 : f32
    %59 = vector.broadcast %cst_22 : f32 to vector<32x32xf32>
    %60 = arith.addf %58, %59 : vector<32x32xf32>
    %61 = arith.mulf %53, %60 : vector<32x32xf32>
    %62 = arith.truncf %61 : vector<32x32xf32> to vector<32x32xbf16>
    %c0_23 = arith.constant 0 : index
    %c0_24 = arith.constant 0 : index
    %63 = vector.load %arg9[%c0_23, %c0_24] : memref<32x320xbf16, #tpu.memory_space<vmem>>, vector<32x32xbf16>
    %cst_25 = arith.constant dense<0.000000e+00> : vector<32x32xf32>
    %64 = tpu.matmul %62, %63, %cst_25 {dimension_numbers = #tpu.dot_dimension_numbers<[1], [0], [0], [1], [0, 0, 1, 1], [], []>} : vector<32x32xbf16>, vector<32x32xbf16>, vector<32x32xf32> -> vector<32x32xf32>
    %c0_26 = arith.constant 0 : index
    %c128 = arith.constant 128 : index
    %65 = vector.load %arg10[%c0_26, %c128] : memref<1x544xf32, #tpu.memory_space<vmem>>, vector<1x32xf32>
    %66 = vector.broadcast %65 : vector<1x32xf32> to vector<32x32xf32>
    %67 = arith.addf %64, %66 : vector<32x32xf32>
    %cst_27 = arith.constant 5.000000e-01 : f32
    %68 = vector.broadcast %cst_27 : f32 to vector<32x32xf32>
    %69 = arith.mulf %68, %67 : vector<32x32xf32>
    %70 = math.tanh %69 : vector<32x32xf32>
    %cst_28 = arith.constant 5.000000e-01 : f32
    %71 = vector.broadcast %cst_28 : f32 to vector<32x32xf32>
    %72 = arith.mulf %71, %70 : vector<32x32xf32>
    %cst_29 = arith.constant 5.000000e-01 : f32
    %73 = vector.broadcast %cst_29 : f32 to vector<32x32xf32>
    %74 = arith.addf %72, %73 : vector<32x32xf32>
    %75 = arith.mulf %67, %74 : vector<32x32xf32>
    %76 = vector.extract_strided_slice %3 {offsets = [0, 0], sizes = [32, 16], strides = [1, 1]} : vector<64x16xbf16> to vector<32x16xbf16>
    %77 = arith.truncf %75 : vector<32x32xf32> to vector<32x32xbf16>
    %cst_30 = arith.constant dense<0.000000e+00> : vector<16x32xf32>
    %78 = tpu.matmul %76, %77, %cst_30 {dimension_numbers = #tpu.dot_dimension_numbers<[0], [0], [1], [1], [0, 1, 1, 1], [], []>} : vector<32x16xbf16>, vector<32x32xbf16>, vector<16x32xf32> -> vector<16x32xf32>
    %79 = tpu.concatenate %37, %78 in 1 : vector<16x32xf32>, vector<16x32xf32> -> vector<16x64xf32>
    %80 = arith.truncf %79 : vector<16x64xf32> to vector<16x64xbf16>
    %c0_31 = arith.constant 0 : index
    %c32_32 = arith.constant 32 : index
    %81 = vector.load %arg8[%c0_31, %c32_32] : memref<64x96xbf16, #tpu.memory_space<vmem>>, vector<64x32xbf16>
    %cst_33 = arith.constant dense<0.000000e+00> : vector<16x32xf32>
    %82 = tpu.matmul %80, %81, %cst_33 {dimension_numbers = #tpu.dot_dimension_numbers<[1], [0], [0], [1], [0, 0, 1, 1], [], []>} : vector<16x64xbf16>, vector<64x32xbf16>, vector<16x32xf32> -> vector<16x32xf32>
    %c0_34 = arith.constant 0 : index
    %c160 = arith.constant 160 : index
    %83 = vector.load %arg10[%c0_34, %c160] : memref<1x544xf32, #tpu.memory_space<vmem>>, vector<1x32xf32>
    %84 = vector.broadcast %83 : vector<1x32xf32> to vector<16x32xf32>
    %85 = arith.addf %82, %84 : vector<16x32xf32>
    %cst_35 = arith.constant 5.000000e-01 : f32
    %86 = vector.broadcast %cst_35 : f32 to vector<16x32xf32>
    %87 = arith.mulf %86, %85 : vector<16x32xf32>
    %88 = math.tanh %87 : vector<16x32xf32>
    %cst_36 = arith.constant 5.000000e-01 : f32
    %89 = vector.broadcast %cst_36 : f32 to vector<16x32xf32>
    %90 = arith.mulf %89, %88 : vector<16x32xf32>
    %cst_37 = arith.constant 5.000000e-01 : f32
    %91 = vector.broadcast %cst_37 : f32 to vector<16x32xf32>
    %92 = arith.addf %90, %91 : vector<16x32xf32>
    %93 = arith.mulf %85, %92 : vector<16x32xf32>
    %94 = arith.truncf %93 : vector<16x32xf32> to vector<16x32xbf16>
    %c0_38 = arith.constant 0 : index
    %c32_39 = arith.constant 32 : index
    %95 = vector.load %arg9[%c0_38, %c32_39] : memref<32x320xbf16, #tpu.memory_space<vmem>>, vector<32x32xbf16>
    %cst_40 = arith.constant dense<0.000000e+00> : vector<16x32xf32>
    %96 = tpu.matmul %94, %95, %cst_40 {dimension_numbers = #tpu.dot_dimension_numbers<[1], [0], [0], [1], [0, 0, 1, 1], [], []>} : vector<16x32xbf16>, vector<32x32xbf16>, vector<16x32xf32> -> vector<16x32xf32>
    %c0_41 = arith.constant 0 : index
    %c192 = arith.constant 192 : index
    %97 = vector.load %arg10[%c0_41, %c192] : memref<1x544xf32, #tpu.memory_space<vmem>>, vector<1x32xf32>
    %98 = vector.broadcast %97 : vector<1x32xf32> to vector<16x32xf32>
    %99 = arith.addf %96, %98 : vector<16x32xf32>
    %100 = arith.addf %37, %99 : vector<16x32xf32>
    %101 = arith.truncf %100 : vector<16x32xf32> to vector<16x32xbf16>
    %c0_42 = arith.constant 0 : index
    %c64_43 = arith.constant 64 : index
    %102 = vector.load %arg9[%c0_42, %c64_43] : memref<32x320xbf16, #tpu.memory_space<vmem>>, vector<32x32xbf16>
    %cst_44 = arith.constant dense<0.000000e+00> : vector<16x32xf32>
    %103 = tpu.matmul %101, %102, %cst_44 {dimension_numbers = #tpu.dot_dimension_numbers<[1], [0], [0], [1], [0, 0, 1, 1], [], []>} : vector<16x32xbf16>, vector<32x32xbf16>, vector<16x32xf32> -> vector<16x32xf32>
    %c0_45 = arith.constant 0 : index
    %c224 = arith.constant 224 : index
    %104 = vector.load %arg10[%c0_45, %c224] : memref<1x544xf32, #tpu.memory_space<vmem>>, vector<1x32xf32>
    %105 = vector.broadcast %104 : vector<1x32xf32> to vector<16x32xf32>
    %106 = arith.addf %103, %105 : vector<16x32xf32>
    %c0_46 = arith.constant 0 : index
    %c0_47 = arith.constant 0 : index
    %107 = vector.load %arg3[%c0_46, %c0_47] : memref<16x2xbf16, #tpu.memory_space<vmem>>, vector<16x2xbf16>
    %108 = arith.truncf %106 : vector<16x32xf32> to vector<16x32xbf16>
    %cst_48 = arith.constant dense<0.000000e+00> : vector<2x32xf32>
    %109 = tpu.matmul %107, %108, %cst_48 {dimension_numbers = #tpu.dot_dimension_numbers<[0], [0], [1], [1], [0, 1, 1, 1], [], []>} : vector<16x2xbf16>, vector<16x32xbf16>, vector<2x32xf32> -> vector<2x32xf32>
    %c0_49 = arith.constant 0 : index
    %c0_50 = arith.constant 0 : index
    %110 = vector.load %arg5[%c0_49, %c0_50] : memref<2x1xf32, #tpu.memory_space<vmem>>, vector<2x1xf32>
    %111 = vector.broadcast %110 : vector<2x1xf32> to vector<2x32xf32>
    %112 = arith.mulf %109, %111 : vector<2x32xf32>
    %113 = arith.truncf %112 : vector<2x32xf32> to vector<2x32xbf16>
    %c0_51 = arith.constant 0 : index
    %c96_52 = arith.constant 96 : index
    %114 = vector.load %arg9[%c0_51, %c96_52] : memref<32x320xbf16, #tpu.memory_space<vmem>>, vector<32x64xbf16>
    %cst_53 = arith.constant dense<0.000000e+00> : vector<2x64xf32>
    %115 = tpu.matmul %113, %114, %cst_53 {dimension_numbers = #tpu.dot_dimension_numbers<[1], [0], [0], [1], [0, 0, 1, 1], [], []>} : vector<2x32xbf16>, vector<32x64xbf16>, vector<2x64xf32> -> vector<2x64xf32>
    %116 = vector.extract_strided_slice %115 {offsets = [0, 0], sizes = [2, 32], strides = [1, 1]} : vector<2x64xf32> to vector<2x32xf32>
    %c0_54 = arith.constant 0 : index
    %c256 = arith.constant 256 : index
    %117 = vector.load %arg10[%c0_54, %c256] : memref<1x544xf32, #tpu.memory_space<vmem>>, vector<1x32xf32>
    %118 = vector.broadcast %117 : vector<1x32xf32> to vector<2x32xf32>
    %119 = arith.addf %116, %118 : vector<2x32xf32>
    %120 = vector.extract_strided_slice %115 {offsets = [0, 32], sizes = [2, 32], strides = [1, 1]} : vector<2x64xf32> to vector<2x32xf32>
    %c0_55 = arith.constant 0 : index
    %c288 = arith.constant 288 : index
    %121 = vector.load %arg10[%c0_55, %c288] : memref<1x544xf32, #tpu.memory_space<vmem>>, vector<1x32xf32>
    %122 = vector.broadcast %121 : vector<1x32xf32> to vector<2x32xf32>
    %123 = arith.addf %120, %122 : vector<2x32xf32>
    %cst_56 = arith.constant 0.000000e+00 : f32
    %124 = vector.broadcast %cst_56 : f32 to vector<2x32xf32>
    %125 = arith.maximumf %123, %124 : vector<2x32xf32>
    %126 = vector.broadcast %cst_56 : f32 to vector<2x32xf32>
    %127 = arith.subf %123, %126 : vector<2x32xf32>
    %128 = arith.cmpf one, %127, %127 : vector<2x32xf32>
    %129 = vector.broadcast %cst_56 : f32 to vector<2x32xf32>
    %130 = arith.addf %123, %129 : vector<2x32xf32>
    %131 = math.absf %127 : vector<2x32xf32>
    %cst_57 = arith.constant 0.000000e+00 : f32
    %132 = vector.broadcast %cst_57 : f32 to vector<2x32xf32>
    %133 = arith.subf %132, %131 : vector<2x32xf32>
    %134 = math.exp %133 : vector<2x32xf32>
    %135 = math.log1p %134 : vector<2x32xf32>
    %136 = arith.addf %125, %135 : vector<2x32xf32>
    %137 = arith.select %128, %130, %136 : vector<2x32xi1>, vector<2x32xf32>
    %cst_58 = arith.constant 9.99999997E-7 : f32
    %138 = vector.broadcast %cst_58 : f32 to vector<2x32xf32>
    %139 = arith.addf %137, %138 : vector<2x32xf32>
    %c0_59 = arith.constant 0 : index
    %c0_60 = arith.constant 0 : index
    %140 = vector.load %arg6[%c0_59, %c0_60] : memref<2x32xf32, #tpu.memory_space<vmem>>, vector<2x32xf32>
    %141 = arith.mulf %139, %140 : vector<2x32xf32>
    %142 = arith.addf %119, %141 : vector<2x32xf32>
    %cst_61 = arith.constant 0.000000e+00 : f32
    %143 = vector.broadcast %cst_61 : f32 to vector<2x32xf32>
    %144 = tpu.concatenate %119, %139, %142, %143 in 1 : vector<2x32xf32>, vector<2x32xf32>, vector<2x32xf32>, vector<2x32xf32> -> vector<2x128xf32>
    %c0_62 = arith.constant 0 : index
    %c0_63 = arith.constant 0 : index
    %145 = vector.load %arg11[%c0_62, %c0_63] : memref<2x128xf32, #tpu.memory_space<vmem>>, vector<2x128xf32>
    tpu.vector_store %arg11[%c0_62, %c0_63], %144 {strides = array<i32>} : memref<2x128xf32, #tpu.memory_space<vmem>>, vector<2x128xf32>,
    %c0_64 = arith.constant 0 : index
    %c0_65 = arith.constant 0 : index
    %146 = vector.load %arg3[%c0_64, %c0_65] : memref<16x2xbf16, #tpu.memory_space<vmem>>, vector<16x2xbf16>
    %147 = arith.extf %146 : vector<16x2xbf16> to vector<16x2xf32>
    %cst_66 = arith.constant dense<0.000000e+00> : vector<16x32xf32>
    %148 = tpu.matmul %147, %142, %cst_66 {dimension_numbers = #tpu.dot_dimension_numbers<[1], [0], [0], [1], [0, 0, 1, 1], [], []>} : vector<16x2xf32>, vector<2x32xf32>, vector<16x32xf32> -> vector<16x32xf32>
    %c0_67 = arith.constant 0 : index
    %c320 = arith.constant 320 : index
    %149 = vector.load %arg10[%c0_67, %c320] : memref<1x544xf32, #tpu.memory_space<vmem>>, vector<1x32xf32>
    %150 = vector.broadcast %1 : vector<16x1xf32> to vector<16x32xf32>
    %151 = vector.broadcast %149 : vector<1x32xf32> to vector<16x32xf32>
    %152 = arith.mulf %150, %151 : vector<16x32xf32>
    %153 = arith.truncf %148 : vector<16x32xf32> to vector<16x32xbf16>
    %c0_68 = arith.constant 0 : index
    %c160_69 = arith.constant 160 : index
    %154 = vector.load %arg9[%c0_68, %c160_69] : memref<32x320xbf16, #tpu.memory_space<vmem>>, vector<32x32xbf16>
    %cst_70 = arith.constant dense<0.000000e+00> : vector<16x32xf32>
    %155 = tpu.matmul %153, %154, %cst_70 {dimension_numbers = #tpu.dot_dimension_numbers<[1], [0], [0], [1], [0, 0, 1, 1], [], []>} : vector<16x32xbf16>, vector<32x32xbf16>, vector<16x32xf32> -> vector<16x32xf32>
    %156 = arith.addf %152, %155 : vector<16x32xf32>
    %c0_71 = arith.constant 0 : index
    %c352 = arith.constant 352 : index
    %157 = vector.load %arg10[%c0_71, %c352] : memref<1x544xf32, #tpu.memory_space<vmem>>, vector<1x32xf32>
    %158 = vector.broadcast %157 : vector<1x32xf32> to vector<16x32xf32>
    %159 = arith.addf %156, %158 : vector<16x32xf32>
    %160 = arith.truncf %159 : vector<16x32xf32> to vector<16x32xbf16>
    %c0_72 = arith.constant 0 : index
    %c192_73 = arith.constant 192 : index
    %161 = vector.load %arg9[%c0_72, %c192_73] : memref<32x320xbf16, #tpu.memory_space<vmem>>, vector<32x32xbf16>
    %cst_74 = arith.constant dense<0.000000e+00> : vector<16x32xf32>
    %162 = tpu.matmul %160, %161, %cst_74 {dimension_numbers = #tpu.dot_dimension_numbers<[1], [0], [0], [1], [0, 0, 1, 1], [], []>} : vector<16x32xbf16>, vector<32x32xbf16>, vector<16x32xf32> -> vector<16x32xf32>
    %c0_75 = arith.constant 0 : index
    %c384 = arith.constant 384 : index
    %163 = vector.load %arg10[%c0_75, %c384] : memref<1x544xf32, #tpu.memory_space<vmem>>, vector<1x32xf32>
    %164 = vector.broadcast %163 : vector<1x32xf32> to vector<16x32xf32>
    %165 = arith.addf %162, %164 : vector<16x32xf32>
    %166 = arith.truncf %165 : vector<16x32xf32> to vector<16x32xbf16>
    %cst_76 = arith.constant dense<0.000000e+00> : vector<64x32xf32>
    %167 = tpu.matmul %3, %166, %cst_76 {dimension_numbers = #tpu.dot_dimension_numbers<[1], [0], [0], [1], [0, 0, 1, 1], [], []>} : vector<64x16xbf16>, vector<16x32xbf16>, vector<64x32xf32> -> vector<64x32xf32>
    %168 = vector.extract_strided_slice %167 {offsets = [0, 0], sizes = [32, 32], strides = [1, 1]} : vector<64x32xf32> to vector<32x32xf32>
    %169 = vector.extract_strided_slice %167 {offsets = [32, 0], sizes = [32, 32], strides = [1, 1]} : vector<64x32xf32> to vector<32x32xf32>
    %170 = tpu.concatenate %168, %169 in 1 : vector<32x32xf32>, vector<32x32xf32> -> vector<32x64xf32>
    %171 = arith.truncf %170 : vector<32x64xf32> to vector<32x64xbf16>
    %c0_77 = arith.constant 0 : index
    %c64_78 = arith.constant 64 : index
    %172 = vector.load %arg8[%c0_77, %c64_78] : memref<64x96xbf16, #tpu.memory_space<vmem>>, vector<64x32xbf16>
    %cst_79 = arith.constant dense<0.000000e+00> : vector<32x32xf32>
    %173 = tpu.matmul %171, %172, %cst_79 {dimension_numbers = #tpu.dot_dimension_numbers<[1], [0], [0], [1], [0, 0, 1, 1], [], []>} : vector<32x64xbf16>, vector<64x32xbf16>, vector<32x32xf32> -> vector<32x32xf32>
    %c0_80 = arith.constant 0 : index
    %c416 = arith.constant 416 : index
    %174 = vector.load %arg10[%c0_80, %c416] : memref<1x544xf32, #tpu.memory_space<vmem>>, vector<1x32xf32>
    %175 = vector.broadcast %25 : vector<32x1xf32> to vector<32x32xf32>
    %176 = vector.broadcast %174 : vector<1x32xf32> to vector<32x32xf32>
    %177 = arith.mulf %175, %176 : vector<32x32xf32>
    %178 = arith.addf %173, %177 : vector<32x32xf32>
    %c0_81 = arith.constant 0 : index
    %c448 = arith.constant 448 : index
    %179 = vector.load %arg10[%c0_81, %c448] : memref<1x544xf32, #tpu.memory_space<vmem>>, vector<1x32xf32>
    %180 = vector.broadcast %179 : vector<1x32xf32> to vector<32x32xf32>
    %181 = arith.addf %178, %180 : vector<32x32xf32>
    %cst_82 = arith.constant 5.000000e-01 : f32
    %182 = vector.broadcast %cst_82 : f32 to vector<32x32xf32>
    %183 = arith.mulf %182, %181 : vector<32x32xf32>
    %184 = math.tanh %183 : vector<32x32xf32>
    %cst_83 = arith.constant 5.000000e-01 : f32
    %185 = vector.broadcast %cst_83 : f32 to vector<32x32xf32>
    %186 = arith.mulf %185, %184 : vector<32x32xf32>
    %cst_84 = arith.constant 5.000000e-01 : f32
    %187 = vector.broadcast %cst_84 : f32 to vector<32x32xf32>
    %188 = arith.addf %186, %187 : vector<32x32xf32>
    %189 = arith.mulf %181, %188 : vector<32x32xf32>
    %190 = arith.truncf %189 : vector<32x32xf32> to vector<32x32xbf16>
    %c0_85 = arith.constant 0 : index
    %c224_86 = arith.constant 224 : index
    %191 = vector.load %arg9[%c0_85, %c224_86] : memref<32x320xbf16, #tpu.memory_space<vmem>>, vector<32x32xbf16>
    %cst_87 = arith.constant dense<0.000000e+00> : vector<32x32xf32>
    %192 = tpu.matmul %190, %191, %cst_87 {dimension_numbers = #tpu.dot_dimension_numbers<[1], [0], [0], [1], [0, 0, 1, 1], [], []>} : vector<32x32xbf16>, vector<32x32xbf16>, vector<32x32xf32> -> vector<32x32xf32>
    %c0_88 = arith.constant 0 : index
    %c480 = arith.constant 480 : index
    %193 = vector.load %arg10[%c0_88, %c480] : memref<1x544xf32, #tpu.memory_space<vmem>>, vector<1x32xf32>
    %194 = vector.broadcast %193 : vector<1x32xf32> to vector<32x32xf32>
    %195 = arith.addf %192, %194 : vector<32x32xf32>
    %cst_89 = arith.constant 5.000000e-01 : f32
    %196 = vector.broadcast %cst_89 : f32 to vector<32x32xf32>
    %197 = arith.mulf %196, %195 : vector<32x32xf32>
    %198 = math.tanh %197 : vector<32x32xf32>
    %cst_90 = arith.constant 5.000000e-01 : f32
    %199 = vector.broadcast %cst_90 : f32 to vector<32x32xf32>
    %200 = arith.mulf %199, %198 : vector<32x32xf32>
    %cst_91 = arith.constant 5.000000e-01 : f32
    %201 = vector.broadcast %cst_91 : f32 to vector<32x32xf32>
    %202 = arith.addf %200, %201 : vector<32x32xf32>
    %203 = arith.mulf %195, %202 : vector<32x32xf32>
    %204 = arith.truncf %203 : vector<32x32xf32> to vector<32x32xbf16>
    %c0_92 = arith.constant 0 : index
    %c256_93 = arith.constant 256 : index
    %205 = vector.load %arg9[%c0_92, %c256_93] : memref<32x320xbf16, #tpu.memory_space<vmem>>, vector<32x32xbf16>
    %cst_94 = arith.constant dense<0.000000e+00> : vector<32x32xf32>
    %206 = tpu.matmul %204, %205, %cst_94 {dimension_numbers = #tpu.dot_dimension_numbers<[1], [0], [0], [1], [0, 0, 1, 1], [], []>} : vector<32x32xbf16>, vector<32x32xbf16>, vector<32x32xf32> -> vector<32x32xf32>
    %c0_95 = arith.constant 0 : index
    %c512 = arith.constant 512 : index
    %207 = vector.load %arg10[%c0_95, %c512] : memref<1x544xf32, #tpu.memory_space<vmem>>, vector<1x32xf32>
    %208 = vector.broadcast %207 : vector<1x32xf32> to vector<32x32xf32>
    %209 = arith.addf %206, %208 : vector<32x32xf32>
    %cst_96 = arith.constant 5.000000e-01 : f32
    %210 = vector.broadcast %cst_96 : f32 to vector<32x32xf32>
    %211 = arith.mulf %210, %209 : vector<32x32xf32>
    %212 = math.tanh %211 : vector<32x32xf32>
    %cst_97 = arith.constant 5.000000e-01 : f32
    %213 = vector.broadcast %cst_97 : f32 to vector<32x32xf32>
    %214 = arith.mulf %213, %212 : vector<32x32xf32>
    %cst_98 = arith.constant 5.000000e-01 : f32
    %215 = vector.broadcast %cst_98 : f32 to vector<32x32xf32>
    %216 = arith.addf %214, %215 : vector<32x32xf32>
    %217 = arith.mulf %209, %216 : vector<32x32xf32>
    %218 = arith.truncf %217 : vector<32x32xf32> to vector<32x32xbf16>
    %c0_99 = arith.constant 0 : index
    %c288_100 = arith.constant 288 : index
    %219 = vector.load %arg9[%c0_99, %c288_100] : memref<32x320xbf16, #tpu.memory_space<vmem>>, vector<32x1xbf16>
    %cst_101 = arith.constant dense<0.000000e+00> : vector<32x1xf32>
    %220 = tpu.matmul %218, %219, %cst_101 {dimension_numbers = #tpu.dot_dimension_numbers<[1], [0], [0], [1], [0, 0, 1, 1], [], []>} : vector<32x32xbf16>, vector<32x1xbf16>, vector<32x1xf32> -> vector<32x1xf32>
    %221 = math.tanh %220 : vector<32x1xf32>
    %222 = vector.broadcast %221 : vector<32x1xf32> to vector<32x3xf32>
    %223 = arith.mulf %30, %222 : vector<32x3xf32>
    %224 = vector.extract_strided_slice %4 {offsets = [0, 0], sizes = [32, 16], strides = [1, 1]} : vector<64x16xf32> to vector<32x16xf32>
    %cst_102 = arith.constant dense<0.000000e+00> : vector<16x3xf32>
    %225 = tpu.matmul %224, %223, %cst_102 {dimension_numbers = #tpu.dot_dimension_numbers<[0], [0], [1], [1], [0, 1, 1, 1], [], []>} : vector<32x16xf32>, vector<32x3xf32>, vector<16x3xf32> -> vector<16x3xf32>
    %c0_103 = arith.constant 0 : index
    %c0_104 = arith.constant 0 : index
    %226 = vector.load %arg4[%c0_103, %c0_104] : memref<16x1xf32, #tpu.memory_space<vmem>>, vector<16x1xf32>
    %227 = vector.broadcast %226 : vector<16x1xf32> to vector<16x3xf32>
    %228 = arith.divf %225, %227 : vector<16x3xf32>
    %cst_105 = arith.constant 5.000000e-01 : f32
    %229 = vector.broadcast %cst_105 : f32 to vector<1x3xf32>
    %230 = arith.mulf %229, %0 : vector<1x3xf32>
    %231 = vector.broadcast %230 : vector<1x3xf32> to vector<16x3xf32>
    %232 = arith.cmpf ogt, %228, %231 : vector<16x3xf32>
    %233 = vector.broadcast %0 : vector<1x3xf32> to vector<16x3xf32>
    %234 = arith.subf %228, %233 : vector<16x3xf32>
    %235 = arith.select %232, %234, %228 : vector<16x3xi1>, vector<16x3xf32>
    %cst_106 = arith.constant -5.000000e-01 : f32
    %236 = vector.broadcast %cst_106 : f32 to vector<1x3xf32>
    %237 = arith.mulf %236, %0 : vector<1x3xf32>
    %238 = vector.broadcast %237 : vector<1x3xf32> to vector<16x3xf32>
    %239 = arith.cmpf olt, %235, %238 : vector<16x3xf32>
    %240 = vector.broadcast %0 : vector<1x3xf32> to vector<16x3xf32>
    %241 = arith.addf %235, %240 : vector<16x3xf32>
    %242 = arith.select %239, %241, %235 : vector<16x3xi1>, vector<16x3xf32>
    %c0_107 = arith.constant 0 : index
    %c0_108 = arith.constant 0 : index
    %243 = vector.load %arg12[%c0_107, %c0_108] : memref<16x3xf32, #tpu.memory_space<vmem>>, vector<16x3xf32>
    tpu.vector_store %arg12[%c0_107, %c0_108], %242 {strides = array<i32>} : memref<16x3xf32, #tpu.memory_space<vmem>>, vector<16x3xf32>,
    return
  }
}

</mosaic_0001>

<llo_original>
// kernel: basic_vae_forward.1
$region0: #{basic_vae_forward.1}
  #allocation0 [shape = 'u32[]', space=smem, size = 0x4, offset = 0x4, fixed_abs, tag = 'smem constant byte address 0x4 - core index']
  #allocation1 [shape = 'u32[144,128]{1,0:T(1,128)}', space=vmem, size = 0x12000, scoped, tag = 'internal scratch']
  %s0 = inlined_call_operand.vmem [shape: f32[16,1], index: 0, kind: input, shape index: {}]
  %s1 = inlined_call_operand.vmem [shape: f32[16,3], index: 1, kind: input, shape index: {}]
  %s2 = inlined_call_operand.vmem [shape: bf16[64,16], index: 2, kind: input, shape index: {}]
  %s3 = inlined_call_operand.vmem [shape: bf16[16,2], index: 3, kind: input, shape index: {}]
  %s4 = inlined_call_operand.vmem [shape: f32[16,1], index: 4, kind: input, shape index: {}]
  %s5 = inlined_call_operand.vmem [shape: f32[2,1], index: 5, kind: input, shape index: {}]
  %s6 = inlined_call_operand.vmem [shape: f32[2,32], index: 6, kind: input, shape index: {}]
  %s7 = inlined_call_operand.vmem [shape: f32[1,3], index: 7, kind: input, shape index: {}]
  %s8 = inlined_call_operand.vmem [shape: bf16[64,96], index: 8, kind: input, shape index: {}]
  %s9 = inlined_call_operand.vmem [shape: bf16[32,320], index: 9, kind: input, shape index: {}]
  %s10 = inlined_call_operand.vmem [shape: f32[1,544], index: 10, kind: input, shape index: {}]
  %s11 = inlined_call_operand.vmem [shape: f32[2,128], index: 11, kind: output, shape index: {0}]
  %s12 = inlined_call_operand.vmem [shape: f32[16,3], index: 12, kind: output, shape index: {1}]
  %13 = xla_tuple %s11, %s12
  %s14 = sld [smem:[#allocation0]]
  $region62: #{basic_vae_forward.1} parent=0
    _
  %s16 = ssub.s32 1, %s14
  %s17 = scalar_select 0, %s16, %s14
  // Predicated region
  $region2: #{basic_vae_forward.1} parent=0 // pred_check
    _
  $region3: #{basic_vae_forward.1} parent=0 // pred_check_branch
    %19 = sbr.rel (0) target = $region5
  $region4: #{basic_vae_forward.1} parent=0 // pred_region
    _
  $region5: #{basic_vae_forward.1} parent=0 // pred_fallthru
    _
  // Predicated region
  $region6: #{basic_vae_forward.1} parent=0 // pred_check
    _
  $region7: #{basic_vae_forward.1} parent=0 // pred_check_branch
    %21 = sbr.rel (0) target = $region9
  $region8: #{basic_vae_forward.1} parent=0 // pred_region
    _
  $region9: #{basic_vae_forward.1} parent=0 // pred_fallthru
    _
  // Predicated region
  $region10: #{basic_vae_forward.1} parent=0 // pred_check
    _
  $region11: #{basic_vae_forward.1} parent=0 // pred_check_branch
    %23 = sbr.rel (0) target = $region13
  $region12: #{basic_vae_forward.1} parent=0 // pred_region
    _
  $region13: #{basic_vae_forward.1} parent=0 // pred_fallthru
    _
  // Predicated region
  $region14: #{basic_vae_forward.1} parent=0 // pred_check
    _
  $region15: #{basic_vae_forward.1} parent=0 // pred_check_branch
    %25 = sbr.rel (0) target = $region17
  $region16: #{basic_vae_forward.1} parent=0 // pred_region
    _
  $region17: #{basic_vae_forward.1} parent=0 // pred_fallthru
    _
  // Predicated region
  $region18: #{basic_vae_forward.1} parent=0 // pred_check
    _
  $region19: #{basic_vae_forward.1} parent=0 // pred_check_branch
    %27 = sbr.rel (0) target = $region21
  $region20: #{basic_vae_forward.1} parent=0 // pred_region
    _
  $region21: #{basic_vae_forward.1} parent=0 // pred_fallthru
    _
  // Predicated region
  $region22: #{basic_vae_forward.1} parent=0 // pred_check
    _
  $region23: #{basic_vae_forward.1} parent=0 // pred_check_branch
    %29 = sbr.rel (0) target = $region25
  $region24: #{basic_vae_forward.1} parent=0 // pred_region
    _
  $region25: #{basic_vae_forward.1} parent=0 // pred_fallthru
    _
  // Predicated region
  $region26: #{basic_vae_forward.1} parent=0 // pred_check
    _
  $region27: #{basic_vae_forward.1} parent=0 // pred_check_branch
    %31 = sbr.rel (0) target = $region29
  $region28: #{basic_vae_forward.1} parent=0 // pred_region
    _
  $region29: #{basic_vae_forward.1} parent=0 // pred_fallthru
    _
  // Predicated region
  $region30: #{basic_vae_forward.1} parent=0 // pred_check
    _
  $region31: #{basic_vae_forward.1} parent=0 // pred_check_branch
    %33 = sbr.rel (0) target = $region33
  $region32: #{basic_vae_forward.1} parent=0 // pred_region
    _
  $region33: #{basic_vae_forward.1} parent=0 // pred_fallthru
    _
  // Predicated region
  $region34: #{basic_vae_forward.1} parent=0 // pred_check
    _
  $region35: #{basic_vae_forward.1} parent=0 // pred_check_branch
    %35 = sbr.rel (0) target = $region37
  $region36: #{basic_vae_forward.1} parent=0 // pred_region
    _
  $region37: #{basic_vae_forward.1} parent=0 // pred_fallthru
    _
  // Predicated region
  $region38: #{basic_vae_forward.1} parent=0 // pred_check
    _
  $region39: #{basic_vae_forward.1} parent=0 // pred_check_branch
    %37 = sbr.rel (0) target = $region41
  $region40: #{basic_vae_forward.1} parent=0 // pred_region
    _
  $region41: #{basic_vae_forward.1} parent=0 // pred_fallthru
    _
  // Predicated region
  $region42: #{basic_vae_forward.1} parent=0 // pred_check
    _
  $region43: #{basic_vae_forward.1} parent=0 // pred_check_branch
    %39 = sbr.rel (0) target = $region45
  $region44: #{basic_vae_forward.1} parent=0 // pred_region
    _
  $region45: #{basic_vae_forward.1} parent=0 // pred_fallthru
    _
  %v41 = vld [vmem:[%s7] sm:$0x1]
  %v42 = vld [vmem:[%s0] sm:$0xff]
  %v43 = vld [vmem:[%s0 + $0x8] sm:$0xff]
  %v44 = vld [vmem:[%s1] sm:$0xff]
  %v45 = vld [vmem:[%s1 + $0x8] sm:$0xff]
  %v46 = vld [vmem:[%s2] sm:$0xf]
  %v47 = vld [vmem:[%s2 + $0x4] sm:$0xf]
  %v48 = vld [vmem:[%s2 + $0x8] sm:$0xf]
  %v49 = vld [vmem:[%s2 + $0xc] sm:$0xf]
  %v50 = vld [vmem:[%s2 + $0x10] sm:$0xf]
  %v51 = vld [vmem:[%s2 + $0x14] sm:$0xf]
  %v52 = vld [vmem:[%s2 + $0x18] sm:$0xf]
  %v53 = vld [vmem:[%s2 + $0x1c] sm:$0xf]
  %v54 = vunpack.c.l.bf16 %v46
  %v55 = vunpack.c.l.bf16 %v47
  %v56 = vunpack.c.l.bf16 %v48
  %v57 = vunpack.c.l.bf16 %v49
  %v58 = vunpack.c.l.bf16 %v50
  %v59 = vunpack.c.l.bf16 %v51
  %v60 = vunpack.c.l.bf16 %v52
  %v61 = vunpack.c.l.bf16 %v53
  %vm62 = vcmask 130048
  %v64 = vsel %vm62, %v54, 0
  %v67 = vsel %vm62, %v55, 0
  %v70 = vsel %vm62, %v56, 0
  %v73 = vsel %vm62, %v57, 0
  %v76 = vsel %vm62, %v58, 0
  %v79 = vsel %vm62, %v59, 0
  %v82 = vsel %vm62, %v60, 0
  %v85 = vsel %vm62, %v61, 0
  %87 = vmatprep.subr.mxu0 0.0
  %88 = vmatpush1.msra.mxu0 %v44
  %89 = vmatprep.subr.mxu0 0.0
  %90 = vmatpush1.msra.mxu0 %v45
  %91 = vmatprep.subr.mxu0 0.0
  %92 = vmatpush1.msra.mxu0 0.0
  %93 = vmatprep.subr.mxu0 0.0
  %94 = vmatpush1.msra.mxu0 0.0
  %95 = vmatprep.subr.mxu0 0.0
  %96 = vmatpush1.msra.mxu0 0.0
  %97 = vmatprep.subr.mxu0 0.0
  %98 = vmatpush1.msra.mxu0 0.0
  %99 = vmatprep.subr.mxu0 0.0
  %100 = vmatpush1.msra.mxu0 0.0
  %101 = vmatprep.subr.mxu0 0.0
  %102 = vmatpush1.msra.mxu0 0.0
  %103 = vmatprep.subr.mxu0 0.0
  %104 = vmatpush1.msra.mxu0 0.0
  %105 = vmatprep.subr.mxu0 0.0
  %106 = vmatpush1.msra.mxu0 0.0
  %107 = vmatprep.subr.mxu0 0.0
  %108 = vmatpush1.msra.mxu0 0.0
  %109 = vmatprep.subr.mxu0 0.0
  %110 = vmatpush1.msra.mxu0 0.0
  %111 = vmatprep.subr.mxu0 0.0
  %112 = vmatpush1.msra.mxu0 0.0
  %113 = vmatprep.subr.mxu0 0.0
  %114 = vmatpush1.msra.mxu0 0.0
  %115 = vmatprep.subr.mxu0 0.0
  %116 = vmatpush1.msra.mxu0 0.0
  %117 = vmatprep.subr.mxu0 0.0
  %118 = vmatpush1.msra.mxu0 0.0
  %119 = vmatprep.subr.mxu0 0.0
  %120 = vmatpush1.msra.mxu0 0.0
  %121 = vmatprep.subr.mxu0 0.0
  %122 = vmatpush1.msra.mxu0 0.0
  %123 = vmatprep.subr.mxu0 0.0
  %124 = vmatpush1.msra.mxu0 0.0
  %125 = vmatprep.subr.mxu0 0.0
  %126 = vmatpush1.msra.mxu0 0.0
  %127 = vmatprep.subr.mxu0 0.0
  %128 = vmatpush1.msra.mxu0 0.0
  %129 = vmatprep.subr.mxu0 0.0
  %130 = vmatpush1.msra.mxu0 0.0
  %131 = vmatprep.subr.mxu0 0.0
  %132 = vmatpush1.msra.mxu0 0.0
  %133 = vmatprep.subr.mxu0 0.0
  %134 = vmatpush1.msra.mxu0 0.0
  %135 = vmatprep.subr.mxu0 0.0
  %136 = vmatpush1.msra.mxu0 0.0
  %137 = vmatprep.subr.mxu0 0.0
  %138 = vmatpush1.msra.mxu0 0.0
  %139 = vmatprep.subr.mxu0 0.0
  %140 = vmatpush1.msra.mxu0 0.0
  %141 = vmatprep.subr.mxu0 0.0
  %142 = vmatpush1.msra.mxu0 0.0
  %143 = vmatprep.subr.mxu0 0.0
  %144 = vmatpush1.msra.mxu0 0.0
  %145 = vmatprep.subr.mxu0 0.0
  %146 = vmatpush1.msra.mxu0 0.0
  %147 = vmatprep.subr.mxu0 0.0
  %148 = vmatpush1.msra.mxu0 0.0
  %149 = vmatprep.subr.mxu0 0.0
  %150 = vmatpush1.msra.mxu0 0.0
  %151 = vmatprep.mubr.f32.mxu0 0.0
  %152 = vmatmul.mubr.f32.gmra.mrb[0].mxu0 %v64
  %v153 = vpop.f32.mrb[0].mxu0
  %v154 = vadd.f32 0.0, %v153
  %v155 = vpop.f32.mrb[0].mxu0
  %156 = vmatprep.mubr.f32.mxu0 0.0
  %157 = vmatmul.mubr.f32.gmra.mrb[0].mxu0 %v67
  %v158 = vpop.f32.mrb[0].mxu0
  %v159 = vadd.f32 0.0, %v158
  %v160 = vpop.f32.mrb[0].mxu0
  %161 = vmatprep.mubr.f32.mxu0 0.0
  %162 = vmatmul.mubr.f32.gmra.mrb[0].mxu0 %v70
  %v163 = vpop.f32.mrb[0].mxu0
  %v164 = vadd.f32 0.0, %v163
  %v165 = vpop.f32.mrb[0].mxu0
  %166 = vmatprep.mubr.f32.mxu0 0.0
  %167 = vmatmul.mubr.f32.gmra.mrb[0].mxu0 %v73
  %v168 = vpop.f32.mrb[0].mxu0
  %v169 = vadd.f32 0.0, %v168
  %v170 = vpop.f32.mrb[0].mxu0
  %171 = vmatprep.mubr.f32.mxu0 0.0
  %172 = vmatmul.mubr.f32.gmra.mrb[0].mxu0 %v76
  %v173 = vpop.f32.mrb[0].mxu0
  %v174 = vadd.f32 0.0, %v173
  %v175 = vpop.f32.mrb[0].mxu0
  %176 = vmatprep.mubr.f32.mxu0 0.0
  %177 = vmatmul.mubr.f32.gmra.mrb[0].mxu0 %v79
  %v178 = vpop.f32.mrb[0].mxu0
  %v179 = vadd.f32 0.0, %v178
  %v180 = vpop.f32.mrb[0].mxu0
  %181 = vmatprep.mubr.f32.mxu0 0.0
  %182 = vmatmul.mubr.f32.gmra.mrb[0].mxu0 %v82
  %v183 = vpop.f32.mrb[0].mxu0
  %v184 = vadd.f32 0.0, %v183
  %v185 = vpop.f32.mrb[0].mxu0
  %186 = vmatprep.mubr.f32.mxu0 0.0
  %187 = vmatmul.mubr.f32.gmra.mrb[0].mxu0 %v85
  %v188 = vpop.f32.mrb[0].mxu0
  %v189 = vadd.f32 0.0, %v188
  %v190 = vpop.f32.mrb[0].mxu0
  %191 = vdwg.mxu0
  %v192 = vsub.f32 %v154, %v174
  %v193 = vsub.f32 %v159, %v179
  %v194 = vsub.f32 %v164, %v184
  %v195 = vsub.f32 %v169, %v189
  %v196 = vmul.f32 %v41, 0.5
  %v198 = vlaneseq
  %v199 = vshrl.u32 %v198, 7
  %v200 = vsub.s32 0, %v199
  %v201 = vrot.slane %v196, %v200
  %vm203 = vcmp.gt.f32.partialorder %v192, %v201
  %vm204 = vcmp.gt.f32.partialorder %v193, %v201
  %vm205 = vcmp.gt.f32.partialorder %v194, %v201
  %vm206 = vcmp.gt.f32.partialorder %v195, %v201
  %v208 = vlaneseq
  %v209 = vshrl.u32 %v208, 7
  %v210 = vsub.s32 0, %v209
  %v211 = vrot.slane %v41, %v210
  %v213 = vsub.f32 %v192, %v211
  %v214 = vsub.f32 %v193, %v211
  %v215 = vsub.f32 %v194, %v211
  %v216 = vsub.f32 %v195, %v211
  %v217 = vsel %vm203, %v213, %v192
  %v218 = vsel %vm204, %v214, %v193
  %v219 = vsel %vm205, %v215, %v194
  %v220 = vsel %vm206, %v216, %v195
  %v221 = vmul.f32 %v41, -0.5
  %v223 = vlaneseq
  %v224 = vshrl.u32 %v223, 7
  %v225 = vsub.s32 0, %v224
  %v226 = vrot.slane %v221, %v225
  %vm228 = vcmp.lt.f32.partialorder %v217, %v226
  %vm229 = vcmp.lt.f32.partialorder %v218, %v226
  %vm230 = vcmp.lt.f32.partialorder %v219, %v226
  %vm231 = vcmp.lt.f32.partialorder %v220, %v226
  %v232 = vadd.f32 %v217, %v211
  %v233 = vadd.f32 %v218, %v211
  %v234 = vadd.f32 %v219, %v211
  %v235 = vadd.f32 %v220, %v211
  %v236 = vsel %vm228, %v232, %v217
  %v237 = vsel %vm229, %v233, %v218
  %v238 = vsel %vm230, %v234, %v219
  %v239 = vsel %vm231, %v235, %v220
  %v240 = vmul.f32 %v236, %v236
  %v241 = vmul.f32 %v237, %v237
  %v242 = vmul.f32 %v238, %v238
  %v243 = vmul.f32 %v239, %v239
  %vm244 = vcmask 23552
  %v245 = vsel %vm244, %v240, 0.0
  %246 = vadd.xlane.f32.xlu0 %v245
  %v247 = vpop.xlane.xlu0 %246
  %v248 = vsel %vm244, %v241, 0.0
  %249 = vadd.xlane.f32.xlu0 %v248
  %v250 = vpop.xlane.xlu0 %249
  %v251 = vsel %vm244, %v242, 0.0
  %252 = vadd.xlane.f32.xlu0 %v251
  %v253 = vpop.xlane.xlu0 %252
  %v254 = vsel %vm244, %v243, 0.0
  %255 = vadd.xlane.f32.xlu0 %v254
  %v256 = vpop.xlane.xlu0 %255
  %v257 = vrsqrt.pop %v247
  %v258 = vmul.f32 %v247, %v257
  %vm259 = vcmp.eq.f32.partialorder %v247, inf
  %v260 = vsel %vm259, %v247, %v258
  %vm261 = vcmp.eq.f32.partialorder %v247, 0.0
  %v262 = vand.u32 %v247, 2147483648
  %v263 = vsel %vm261, %v262, %v260
  %v264 = vrsqrt.pop %v250
  %v265 = vmul.f32 %v250, %v264
  %vm266 = vcmp.eq.f32.partialorder %v250, inf
  %v267 = vsel %vm266, %v250, %v265
  %vm268 = vcmp.eq.f32.partialorder %v250, 0.0
  %v269 = vand.u32 %v250, 2147483648
  %v270 = vsel %vm268, %v269, %v267
  %v271 = vrsqrt.pop %v253
  %v272 = vmul.f32 %v253, %v271
  %vm273 = vcmp.eq.f32.partialorder %v253, inf
  %v274 = vsel %vm273, %v253, %v272
  %vm275 = vcmp.eq.f32.partialorder %v253, 0.0
  %v276 = vand.u32 %v253, 2147483648
  %v277 = vsel %vm275, %v276, %v274
  %v278 = vrsqrt.pop %v256
  %v279 = vmul.f32 %v256, %v278
  %vm280 = vcmp.eq.f32.partialorder %v256, inf
  %v281 = vsel %vm280, %v256, %v279
  %vm282 = vcmp.eq.f32.partialorder %v256, 0.0
  %v283 = vand.u32 %v256, 2147483648
  %v284 = vsel %vm282, %v283, %v281
  %v285 = vadd.f32 %v263, 1.0
  %v286 = vadd.f32 %v270, 1.0
  %v287 = vadd.f32 %v277, 1.0
  %v288 = vadd.f32 %v284, 1.0
  %v289 = vrcp.pop %v285
  %v290 = vmul.f32 %v236, %v289
  %v291 = vrcp.pop %v286
  %v292 = vmul.f32 %v237, %v291
  %v293 = vrcp.pop %v287
  %v294 = vmul.f32 %v238, %v293
  %v295 = vrcp.pop %v288
  %v296 = vmul.f32 %v239, %v295
  %v297 = vld [vmem:[%s10] sm:$0x1]
  %299 = vset.pattern.permute.xlu0 0
  %300 = vperm.xlu0 %299, %v42
  %v301 = vpop.permute.xlu0 %300
  %304 = vset.pattern.permute.xlu0 0
  %305 = vperm.xlu0 %304, %v43
  %v306 = vpop.permute.xlu0 %305
  %v309 = vlaneseq
  %v310 = vshrl.u32 %v309, 7
  %v311 = vsub.s32 0, %v310
  %v312 = vrot.slane %v297, %v311
  %v314 = vmul.f32 %v301, %v312
  %v315 = vmul.f32 %v306, %v312
  %316 = vrot.lane.b32.xlu0 %v312, 96
  %v317 = vpop.permute.xlu0 %316
  %v319 = vadd.f32 %v314, %v317
  %v320 = vadd.f32 %v315, %v317
  %v321 = vpack.c.bf16 %v320, %v319
  %v330 = vunpack.c.l.b16 %v46
  %v331 = vunpack.c.l.b16 %v47
  %v332 = vunpack.c.l.b16 %v48
  %v333 = vunpack.c.l.b16 %v49
  %v334 = vunpack.c.l.b16 %v50
  %v335 = vunpack.c.l.b16 %v51
  %v336 = vunpack.c.l.b16 %v52
  %v337 = vunpack.c.l.b16 %v53
  %v338 = vpack.c.b16 %v331, %v330
  %v339 = vpack.c.b16 %v333, %v332
  %v340 = vpack.c.b16 %v335, %v334
  %v341 = vpack.c.b16 %v337, %v336
  %v343 = vsel %vm62, %v338, 0
  %v346 = vsel %vm62, %v339, 0
  %v349 = vsel %vm62, %v340, 0
  %v352 = vsel %vm62, %v341, 0
  %354 = vmatprep.subr.bf16.mxu0 0
  %355 = vmatpush1.bf16.msra.mxu0 %v321
  %356 = vmatprep.subr.bf16.mxu0 0
  %357 = vmatpush1.bf16.msra.mxu0 0
  %358 = vmatprep.subr.bf16.mxu0 0
  %359 = vmatpush1.bf16.msra.mxu0 0
  %360 = vmatprep.subr.bf16.mxu0 0
  %361 = vmatpush1.bf16.msra.mxu0 0
  %362 = vmatprep.subr.bf16.mxu0 0
  %363 = vmatpush1.bf16.msra.mxu0 0
  %364 = vmatprep.subr.bf16.mxu0 0
  %365 = vmatpush1.bf16.msra.mxu0 0
  %366 = vmatprep.subr.bf16.mxu0 0
  %367 = vmatpush1.bf16.msra.mxu0 0
  %368 = vmatprep.subr.bf16.mxu0 0
  %369 = vmatpush1.bf16.msra.mxu0 0
  %370 = vmatprep.subr.bf16.mxu0 0
  %371 = vmatpush1.bf16.msra.mxu0 0
  %372 = vmatprep.subr.bf16.mxu0 0
  %373 = vmatpush1.bf16.msra.mxu0 0
  %374 = vmatprep.subr.bf16.mxu0 0
  %375 = vmatpush1.bf16.msra.mxu0 0
  %376 = vmatprep.subr.bf16.mxu0 0
  %377 = vmatpush1.bf16.msra.mxu0 0
  %378 = vmatprep.subr.bf16.mxu0 0
  %379 = vmatpush1.bf16.msra.mxu0 0
  %380 = vmatprep.subr.bf16.mxu0 0
  %381 = vmatpush1.bf16.msra.mxu0 0
  %382 = vmatprep.subr.bf16.mxu0 0
  %383 = vmatpush1.bf16.msra.mxu0 0
  %384 = vmatprep.subr.bf16.mxu0 0
  %385 = vmatpush1.bf16.msra.mxu0 0
  %386 = vmatprep.mubr.bf16.mxu0 0
  %387 = vmatmul.mubr.bf16.gmra.mrb[0].mxu0 %v343
  %v388 = vpop.f32.mrb[0].mxu0
  %v389 = vadd.f32 0.0, %v388
  %v390 = vpop.f32.mrb[0].mxu0
  %v391 = vpop.f32.mrb[0].mxu0
  %v392 = vadd.f32 0.0, %v391
  %v393 = vpop.f32.mrb[0].mxu0
  %394 = vmatprep.mubr.bf16.mxu0 0
  %395 = vmatmul.mubr.bf16.gmra.mrb[0].mxu0 %v346
  %v396 = vpop.f32.mrb[0].mxu0
  %v397 = vadd.f32 0.0, %v396
  %v398 = vpop.f32.mrb[0].mxu0
  %v399 = vpop.f32.mrb[0].mxu0
  %v400 = vadd.f32 0.0, %v399
  %v401 = vpop.f32.mrb[0].mxu0
  %402 = vmatprep.mubr.bf16.mxu0 0
  %403 = vmatmul.mubr.bf16.gmra.mrb[0].mxu0 %v349
  %v404 = vpop.f32.mrb[0].mxu0
  %v405 = vadd.f32 0.0, %v404
  %v406 = vpop.f32.mrb[0].mxu0
  %v407 = vpop.f32.mrb[0].mxu0
  %v408 = vadd.f32 0.0, %v407
  %v409 = vpop.f32.mrb[0].mxu0
  %410 = vmatprep.mubr.bf16.mxu0 0
  %411 = vmatmul.mubr.bf16.gmra.mrb[0].mxu0 %v352
  %v412 = vpop.f32.mrb[0].mxu0
  %v413 = vadd.f32 0.0, %v412
  %v414 = vpop.f32.mrb[0].mxu0
  %v415 = vpop.f32.mrb[0].mxu0
  %v416 = vadd.f32 0.0, %v415
  %v417 = vpop.f32.mrb[0].mxu0
  %418 = vdwg.mxu0
  %423 = vrot.lane.b32.xlu0 %v405, 32
  %v424 = vpop.permute.xlu0 %423
  %425 = vrot.lane.b32.xlu0 %v408, 32
  %v426 = vpop.permute.xlu0 %425
  %427 = vrot.lane.b32.xlu0 %v413, 32
  %v428 = vpop.permute.xlu0 %427
  %429 = vrot.lane.b32.xlu0 %v416, 32
  %v430 = vpop.permute.xlu0 %429
  %vm435 = vcmask 261120
  %v436 = vsel %vm435, %v389, %v424
  %v437 = vsel %vm435, %v392, %v426
  %v438 = vsel %vm435, %v397, %v428
  %v439 = vsel %vm435, %v400, %v430
  %v440 = vpack.c.bf16 %v437, %v436
  %v441 = vpack.c.bf16 %v439, %v438
  %v442 = vld [vmem:[%s8] sm:$0xf]
  %v443 = vld [vmem:[%s8 + $0x4] sm:$0xf]
  %v444 = vld [vmem:[%s8 + $0x8] sm:$0xf]
  %v445 = vld [vmem:[%s8 + $0xc] sm:$0xf]
  %v446 = vld [vmem:[%s8 + $0x10] sm:$0xf]
  %v447 = vld [vmem:[%s8 + $0x14] sm:$0xf]
  %v448 = vld [vmem:[%s8 + $0x18] sm:$0xf]
  %v449 = vld [vmem:[%s8 + $0x1c] sm:$0xf]
  %v450 = vmul.f32 %v247, %v312
  %v451 = vmul.f32 %v250, %v312
  %v452 = vmul.f32 %v253, %v312
  %v453 = vmul.f32 %v256, %v312
  %v462 = vunpack.c.l.b16 %v442
  %v463 = vunpack.c.l.b16 %v443
  %v464 = vunpack.c.l.b16 %v444
  %v465 = vunpack.c.l.b16 %v445
  %v466 = vunpack.c.l.b16 %v446
  %v467 = vunpack.c.l.b16 %v447
  %v468 = vunpack.c.l.b16 %v448
  %v469 = vunpack.c.l.b16 %v449
  %v470 = vpack.c.b16 %v463, %v462
  %v471 = vpack.c.b16 %v465, %v464
  %v472 = vpack.c.b16 %v467, %v466
  %v473 = vpack.c.b16 %v469, %v468
  %482 = vrot.lane.b32.xlu0 %v450, 64
  %v483 = vpop.permute.xlu0 %482
  %484 = vrot.lane.b32.xlu0 %v451, 64
  %v485 = vpop.permute.xlu0 %484
  %486 = vrot.lane.b32.xlu0 %v452, 64
  %v487 = vpop.permute.xlu0 %486
  %488 = vrot.lane.b32.xlu0 %v453, 64
  %v489 = vpop.permute.xlu0 %488
  %vm494 = vcmask 523264
  %v496 = vsel %vm494, %v440, 0
  %v499 = vsel %vm494, %v441, 0
  %501 = vmatprep.subr.bf16.mxu0 0
  %502 = vmatpush1.bf16.msra.mxu0 %v470
  %503 = vmatprep.subr.bf16.mxu0 0
  %504 = vmatpush1.bf16.msra.mxu0 %v471
  %505 = vmatprep.subr.bf16.mxu0 0
  %506 = vmatpush1.bf16.msra.mxu0 %v472
  %507 = vmatprep.subr.bf16.mxu0 0
  %508 = vmatpush1.bf16.msra.mxu0 %v473
  %509 = vmatprep.subr.bf16.mxu0 0
  %510 = vmatpush1.bf16.msra.mxu0 0
  %511 = vmatprep.subr.bf16.mxu0 0
  %512 = vmatpush1.bf16.msra.mxu0 0
  %513 = vmatprep.subr.bf16.mxu0 0
  %514 = vmatpush1.bf16.msra.mxu0 0
  %515 = vmatprep.subr.bf16.mxu0 0
  %516 = vmatpush1.bf16.msra.mxu0 0
  %517 = vmatprep.subr.bf16.mxu0 0
  %518 = vmatpush1.bf16.msra.mxu0 0
  %519 = vmatprep.subr.bf16.mxu0 0
  %520 = vmatpush1.bf16.msra.mxu0 0
  %521 = vmatprep.subr.bf16.mxu0 0
  %522 = vmatpush1.bf16.msra.mxu0 0
  %523 = vmatprep.subr.bf16.mxu0 0
  %524 = vmatpush1.bf16.msra.mxu0 0
  %525 = vmatprep.subr.bf16.mxu0 0
  %526 = vmatpush1.bf16.msra.mxu0 0
  %527 = vmatprep.subr.bf16.mxu0 0
  %528 = vmatpush1.bf16.msra.mxu0 0
  %529 = vmatprep.subr.bf16.mxu0 0
  %530 = vmatpush1.bf16.msra.mxu0 0
  %531 = vmatprep.subr.bf16.mxu0 0
  %532 = vmatpush1.bf16.msra.mxu0 0
  %533 = vmatprep.mubr.bf16.mxu0 0
  %534 = vmatmul.mubr.bf16.gmra.mrb[0].mxu0 %v496
  %v535 = vpop.f32.mrb[0].mxu0
  %v536 = vadd.f32 %v483, %v535
  %v537 = vpop.f32.mrb[0].mxu0
  %v538 = vpop.f32.mrb[0].mxu0
  %v539 = vadd.f32 %v485, %v538
  %v540 = vpop.f32.mrb[0].mxu0
  %541 = vmatprep.mubr.bf16.mxu0 0
  %542 = vmatmul.mubr.bf16.gmra.mrb[0].mxu0 %v499
  %v543 = vpop.f32.mrb[0].mxu0
  %v544 = vadd.f32 %v487, %v543
  %v545 = vpop.f32.mrb[0].mxu0
  %v546 = vpop.f32.mrb[0].mxu0
  %v547 = vadd.f32 %v489, %v546
  %v548 = vpop.f32.mrb[0].mxu0
  %549 = vdwg.mxu0
  %550 = vrot.lane.b32.xlu0 %v312, 32
  %v551 = vpop.permute.xlu0 %550
  %v553 = vadd.f32 %v536, %v551
  %v554 = vadd.f32 %v539, %v551
  %v555 = vadd.f32 %v544, %v551
  %v556 = vadd.f32 %v547, %v551
  %v557 = vmul.f32 %v553, 0.5
  %v558 = vmul.f32 %v554, 0.5
  %v559 = vmul.f32 %v555, 0.5
  %v560 = vmul.f32 %v556, 0.5
  %v561 = vtanh.pop %v557
  %v562 = vtanh.pop %v558
  %v563 = vtanh.pop %v559
  %v564 = vtanh.pop %v560
  %v565 = vmul.f32 %v561, 0.5
  %v566 = vmul.f32 %v562, 0.5
  %v567 = vmul.f32 %v563, 0.5
  %v568 = vmul.f32 %v564, 0.5
  %v569 = vadd.f32 %v565, 0.5
  %v570 = vadd.f32 %v566, 0.5
  %v571 = vadd.f32 %v567, 0.5
  %v572 = vadd.f32 %v568, 0.5
  %v573 = vmul.f32 %v553, %v569
  %v574 = vmul.f32 %v554, %v570
  %v575 = vmul.f32 %v555, %v571
  %v576 = vmul.f32 %v556, %v572
  %v577 = vpack.c.bf16 %v574, %v573
  %v578 = vpack.c.bf16 %v576, %v575
  %v579 = vld [vmem:[%s9] sm:$0xf]
  %v580 = vld [vmem:[%s9 + $0xc] sm:$0xf]
  %v581 = vld [vmem:[%s9 + $0x18] sm:$0xf]
  %v582 = vld [vmem:[%s9 + $0x24] sm:$0xf]
  %v583 = vld [vmem:[%s10 + $0x1] sm:$0x1]
  %v585 = vlaneseq
  %v586 = vshrl.u32 %v585, 7
  %v587 = vsub.s32 0, %v586
  %v588 = vrot.slane %v583, %v587
  %v594 = vunpack.c.l.b16 %v579
  %v595 = vunpack.c.l.b16 %v580
  %v596 = vunpack.c.l.b16 %v581
  %v597 = vunpack.c.l.b16 %v582
  %v598 = vpack.c.b16 %v595, %v594
  %v599 = vpack.c.b16 %v597, %v596
  %v603 = vsel %vm435, %v577, 0
  %v606 = vsel %vm435, %v578, 0
  %608 = vmatprep.subr.bf16.mxu0 0
  %609 = vmatpush1.bf16.msra.mxu0 %v598
  %610 = vmatprep.subr.bf16.mxu0 0
  %611 = vmatpush1.bf16.msra.mxu0 %v599
  %612 = vmatprep.subr.bf16.mxu0 0
  %613 = vmatpush1.bf16.msra.mxu0 0
  %614 = vmatprep.subr.bf16.mxu0 0
  %615 = vmatpush1.bf16.msra.mxu0 0
  %616 = vmatprep.subr.bf16.mxu0 0
  %617 = vmatpush1.bf16.msra.mxu0 0
  %618 = vmatprep.subr.bf16.mxu0 0
  %619 = vmatpush1.bf16.msra.mxu0 0
  %620 = vmatprep.subr.bf16.mxu0 0
  %621 = vmatpush1.bf16.msra.mxu0 0
  %622 = vmatprep.subr.bf16.mxu0 0
  %623 = vmatpush1.bf16.msra.mxu0 0
  %624 = vmatprep.subr.bf16.mxu0 0
  %625 = vmatpush1.bf16.msra.mxu0 0
  %626 = vmatprep.subr.bf16.mxu0 0
  %627 = vmatpush1.bf16.msra.mxu0 0
  %628 = vmatprep.subr.bf16.mxu0 0
  %629 = vmatpush1.bf16.msra.mxu0 0
  %630 = vmatprep.subr.bf16.mxu0 0
  %631 = vmatpush1.bf16.msra.mxu0 0
  %632 = vmatprep.subr.bf16.mxu0 0
  %633 = vmatpush1.bf16.msra.mxu0 0
  %634 = vmatprep.subr.bf16.mxu0 0
  %635 = vmatpush1.bf16.msra.mxu0 0
  %636 = vmatprep.subr.bf16.mxu0 0
  %637 = vmatpush1.bf16.msra.mxu0 0
  %638 = vmatprep.subr.bf16.mxu0 0
  %639 = vmatpush1.bf16.msra.mxu0 0
  %640 = vmatprep.mubr.bf16.mxu0 0
  %641 = vmatmul.mubr.bf16.gmra.mrb[0].mxu0 %v603
  %v642 = vpop.f32.mrb[0].mxu0
  %v643 = vadd.f32 %v588, %v642
  %v644 = vpop.f32.mrb[0].mxu0
  %v645 = vpop.f32.mrb[0].mxu0
  %v646 = vadd.f32 %v588, %v645
  %v647 = vpop.f32.mrb[0].mxu0
  %648 = vmatprep.mubr.bf16.mxu0 0
  %649 = vmatmul.mubr.bf16.gmra.mrb[0].mxu0 %v606
  %v650 = vpop.f32.mrb[0].mxu0
  %v651 = vadd.f32 %v588, %v650
  %v652 = vpop.f32.mrb[0].mxu0
  %v653 = vpop.f32.mrb[0].mxu0
  %v654 = vadd.f32 %v588, %v653
  %v655 = vpop.f32.mrb[0].mxu0
  %656 = vdwg.mxu0
  %v657 = vmul.f32 %v643, 0.5
  %v658 = vmul.f32 %v646, 0.5
  %v659 = vmul.f32 %v651, 0.5
  %v660 = vmul.f32 %v654, 0.5
  %v661 = vtanh.pop %v657
  %v662 = vtanh.pop %v658
  %v663 = vtanh.pop %v659
  %v664 = vtanh.pop %v660
  %v665 = vmul.f32 %v661, 0.5
  %v666 = vmul.f32 %v662, 0.5
  %v667 = vmul.f32 %v663, 0.5
  %v668 = vmul.f32 %v664, 0.5
  %v669 = vadd.f32 %v665, 0.5
  %v670 = vadd.f32 %v666, 0.5
  %v671 = vadd.f32 %v667, 0.5
  %v672 = vadd.f32 %v668, 0.5
  %v673 = vmul.f32 %v643, %v669
  %v674 = vmul.f32 %v646, %v670
  %v675 = vmul.f32 %v651, %v671
  %v676 = vmul.f32 %v654, %v672
  %v677 = vpack.c.bf16 %v674, %v673
  %v678 = vpack.c.bf16 %v676, %v675
  %681 = vxpose.xlu0.c.b16.start [1/8] %v338, 128
  %682 = vxpose.xlu0.c.b16.cont [2/8] %v339, 128
  %683 = vxpose.xlu0.c.b16.cont [3/8] 0, 128
  %684 = vxpose.xlu0.c.b16.cont [4/8] 0, 128
  %685 = vxpose.xlu0.c.b16.cont [5/8] 0, 128
  %686 = vxpose.xlu0.c.b16.cont [6/8] 0, 128
  %687 = vxpose.xlu0.c.b16.cont [7/8] 0, 128
  %688 = vxpose.xlu0.c.b16.end [8/8] 0, 128
  %v689 = vpop.trf.xlu0
  %v690 = vpop.trf.xlu0
  %v691 = vpop.trf.xlu0
  %v692 = vpop.trf.xlu0
  %v693 = vpop.trf.xlu0
  %v694 = vpop.trf.xlu0
  %v695 = vpop.trf.xlu0
  %v696 = vpop.trf.xlu0
  %v698 = vsel %vm435, %v689, 0
  %700 = vmatprep.subr.bf16.mxu0 0
  %701 = vmatpush1.bf16.msra.mxu0 %v677
  %702 = vmatprep.subr.bf16.mxu0 0
  %703 = vmatpush1.bf16.msra.mxu0 %v678
  %704 = vmatprep.subr.bf16.mxu0 0
  %705 = vmatpush1.bf16.msra.mxu0 0
  %706 = vmatprep.subr.bf16.mxu0 0
  %707 = vmatpush1.bf16.msra.mxu0 0
  %708 = vmatprep.subr.bf16.mxu0 0
  %709 = vmatpush1.bf16.msra.mxu0 0
  %710 = vmatprep.subr.bf16.mxu0 0
  %711 = vmatpush1.bf16.msra.mxu0 0
  %712 = vmatprep.subr.bf16.mxu0 0
  %713 = vmatpush1.bf16.msra.mxu0 0
  %714 = vmatprep.subr.bf16.mxu0 0
  %715 = vmatpush1.bf16.msra.mxu0 0
  %716 = vmatprep.subr.bf16.mxu0 0
  %717 = vmatpush1.bf16.msra.mxu0 0
  %718 = vmatprep.subr.bf16.mxu0 0
  %719 = vmatpush1.bf16.msra.mxu0 0
  %720 = vmatprep.subr.bf16.mxu0 0
  %721 = vmatpush1.bf16.msra.mxu0 0
  %722 = vmatprep.subr.bf16.mxu0 0
  %723 = vmatpush1.bf16.msra.mxu0 0
  %724 = vmatprep.subr.bf16.mxu0 0
  %725 = vmatpush1.bf16.msra.mxu0 0
  %726 = vmatprep.subr.bf16.mxu0 0
  %727 = vmatpush1.bf16.msra.mxu0 0
  %728 = vmatprep.subr.bf16.mxu0 0
  %729 = vmatpush1.bf16.msra.mxu0 0
  %730 = vmatprep.subr.bf16.mxu0 0
  %731 = vmatpush1.bf16.msra.mxu0 0
  %732 = vmatprep.mubr.bf16.mxu0 0
  %733 = vmatmul.mubr.bf16.gmra.mrb[0].mxu0 %v698
  %v734 = vpop.f32.mrb[0].mxu0
  %v735 = vadd.f32 0.0, %v734
  %v736 = vpop.f32.mrb[0].mxu0
  %v737 = vpop.f32.mrb[0].mxu0
  %v738 = vadd.f32 0.0, %v737
  %v739 = vpop.f32.mrb[0].mxu0
  %740 = vdwg.mxu0
  %743 = vrot.lane.b32.xlu0 %v735, 32
  %v744 = vpop.permute.xlu0 %743
  %745 = vrot.lane.b32.xlu0 %v738, 32
  %v746 = vpop.permute.xlu0 %745
  %v749 = vsel %vm435, %v319, %v744
  %v750 = vsel %vm435, %v320, %v746
  %v751 = vpack.c.bf16 %v750, %v749
  %752 = vrot.lane.b32.xlu0 %v470, 96
  %v753 = vpop.permute.xlu0 %752
  %754 = vrot.lane.b32.xlu0 %v471, 96
  %v755 = vpop.permute.xlu0 %754
  %756 = vrot.lane.b32.xlu0 %v472, 96
  %v757 = vpop.permute.xlu0 %756
  %758 = vrot.lane.b32.xlu0 %v473, 96
  %v759 = vpop.permute.xlu0 %758
  %764 = vrot.lane.b32.xlu0 %v588, 96
  %v765 = vpop.permute.xlu0 %764
  %v768 = vsel %vm494, %v751, 0
  %770 = vmatprep.subr.bf16.mxu0 0
  %771 = vmatpush1.bf16.msra.mxu0 %v753
  %772 = vmatprep.subr.bf16.mxu0 0
  %773 = vmatpush1.bf16.msra.mxu0 %v755
  %774 = vmatprep.subr.bf16.mxu0 0
  %775 = vmatpush1.bf16.msra.mxu0 %v757
  %776 = vmatprep.subr.bf16.mxu0 0
  %777 = vmatpush1.bf16.msra.mxu0 %v759
  %778 = vmatprep.subr.bf16.mxu0 0
  %779 = vmatpush1.bf16.msra.mxu0 0
  %780 = vmatprep.subr.bf16.mxu0 0
  %781 = vmatpush1.bf16.msra.mxu0 0
  %782 = vmatprep.subr.bf16.mxu0 0
  %783 = vmatpush1.bf16.msra.mxu0 0
  %784 = vmatprep.subr.bf16.mxu0 0
  %785 = vmatpush1.bf16.msra.mxu0 0
  %786 = vmatprep.subr.bf16.mxu0 0
  %787 = vmatpush1.bf16.msra.mxu0 0
  %788 = vmatprep.subr.bf16.mxu0 0
  %789 = vmatpush1.bf16.msra.mxu0 0
  %790 = vmatprep.subr.bf16.mxu0 0
  %791 = vmatpush1.bf16.msra.mxu0 0
  %792 = vmatprep.subr.bf16.mxu0 0
  %793 = vmatpush1.bf16.msra.mxu0 0
  %794 = vmatprep.subr.bf16.mxu0 0
  %795 = vmatpush1.bf16.msra.mxu0 0
  %796 = vmatprep.subr.bf16.mxu0 0
  %797 = vmatpush1.bf16.msra.mxu0 0
  %798 = vmatprep.subr.bf16.mxu0 0
  %799 = vmatpush1.bf16.msra.mxu0 0
  %800 = vmatprep.subr.bf16.mxu0 0
  %801 = vmatpush1.bf16.msra.mxu0 0
  %802 = vmatprep.mubr.bf16.mxu0 0
  %803 = vmatmul.mubr.bf16.gmra.mrb[0].mxu0 %v768
  %v804 = vpop.f32.mrb[0].mxu0
  %v805 = vadd.f32 %v765, %v804
  %v806 = vpop.f32.mrb[0].mxu0
  %v807 = vpop.f32.mrb[0].mxu0
  %v808 = vadd.f32 %v765, %v807
  %v809 = vpop.f32.mrb[0].mxu0
  %810 = vdwg.mxu0
  %v811 = vmul.f32 %v805, 0.5
  %v812 = vmul.f32 %v808, 0.5
  %v813 = vtanh.pop %v811
  %v814 = vtanh.pop %v812
  %v815 = vmul.f32 %v813, 0.5
  %v816 = vmul.f32 %v814, 0.5
  %v817 = vadd.f32 %v815, 0.5
  %v818 = vadd.f32 %v816, 0.5
  %v819 = vmul.f32 %v805, %v817
  %v820 = vmul.f32 %v808, %v818
  %v821 = vpack.c.bf16 %v820, %v819
  %822 = vrot.lane.b32.xlu0 %v598, 96
  %v823 = vpop.permute.xlu0 %822
  %824 = vrot.lane.b32.xlu0 %v599, 96
  %v825 = vpop.permute.xlu0 %824
  %828 = vrot.lane.b32.xlu0 %v588, 64
  %v829 = vpop.permute.xlu0 %828
  %v832 = vsel %vm435, %v821, 0
  %834 = vmatprep.subr.bf16.mxu0 0
  %835 = vmatpush1.bf16.msra.mxu0 %v823
  %836 = vmatprep.subr.bf16.mxu0 0
  %837 = vmatpush1.bf16.msra.mxu0 %v825
  %838 = vmatprep.subr.bf16.mxu0 0
  %839 = vmatpush1.bf16.msra.mxu0 0
  %840 = vmatprep.subr.bf16.mxu0 0
  %841 = vmatpush1.bf16.msra.mxu0 0
  %842 = vmatprep.subr.bf16.mxu0 0
  %843 = vmatpush1.bf16.msra.mxu0 0
  %844 = vmatprep.subr.bf16.mxu0 0
  %845 = vmatpush1.bf16.msra.mxu0 0
  %846 = vmatprep.subr.bf16.mxu0 0
  %847 = vmatpush1.bf16.msra.mxu0 0
  %848 = vmatprep.subr.bf16.mxu0 0
  %849 = vmatpush1.bf16.msra.mxu0 0
  %850 = vmatprep.subr.bf16.mxu0 0
  %851 = vmatpush1.bf16.msra.mxu0 0
  %852 = vmatprep.subr.bf16.mxu0 0
  %853 = vmatpush1.bf16.msra.mxu0 0
  %854 = vmatprep.subr.bf16.mxu0 0
  %855 = vmatpush1.bf16.msra.mxu0 0
  %856 = vmatprep.subr.bf16.mxu0 0
  %857 = vmatpush1.bf16.msra.mxu0 0
  %858 = vmatprep.subr.bf16.mxu0 0
  %859 = vmatpush1.bf16.msra.mxu0 0
  %860 = vmatprep.subr.bf16.mxu0 0
  %861 = vmatpush1.bf16.msra.mxu0 0
  %862 = vmatprep.subr.bf16.mxu0 0
  %863 = vmatpush1.bf16.msra.mxu0 0
  %864 = vmatprep.subr.bf16.mxu0 0
  %865 = vmatpush1.bf16.msra.mxu0 0
  %866 = vmatprep.mubr.bf16.mxu0 0
  %867 = vmatmul.mubr.bf16.gmra.mrb[0].mxu0 %v832
  %v868 = vpop.f32.mrb[0].mxu0
  %v869 = vadd.f32 %v829, %v868
  %v870 = vpop.f32.mrb[0].mxu0
  %v871 = vpop.f32.mrb[0].mxu0
  %v872 = vadd.f32 %v829, %v871
  %v873 = vpop.f32.mrb[0].mxu0
  %874 = vdwg.mxu0
  %v875 = vadd.f32 %v319, %v869
  %v876 = vadd.f32 %v320, %v872
  %v877 = vpack.c.bf16 %v876, %v875
  %878 = vrot.lane.b32.xlu0 %v598, 64
  %v879 = vpop.permute.xlu0 %878
  %880 = vrot.lane.b32.xlu0 %v599, 64
  %v881 = vpop.permute.xlu0 %880
  %884 = vrot.lane.b32.xlu0 %v588, 32
  %v885 = vpop.permute.xlu0 %884
  %v888 = vsel %vm435, %v877, 0
  %890 = vmatprep.subr.bf16.mxu0 0
  %891 = vmatpush1.bf16.msra.mxu0 %v879
  %892 = vmatprep.subr.bf16.mxu0 0
  %893 = vmatpush1.bf16.msra.mxu0 %v881
  %894 = vmatprep.subr.bf16.mxu0 0
  %895 = vmatpush1.bf16.msra.mxu0 0
  %896 = vmatprep.subr.bf16.mxu0 0
  %897 = vmatpush1.bf16.msra.mxu0 0
  %898 = vmatprep.subr.bf16.mxu0 0
  %899 = vmatpush1.bf16.msra.mxu0 0
  %900 = vmatprep.subr.bf16.mxu0 0
  %901 = vmatpush1.bf16.msra.mxu0 0
  %902 = vmatprep.subr.bf16.mxu0 0
  %903 = vmatpush1.bf16.msra.mxu0 0
  %904 = vmatprep.subr.bf16.mxu0 0
  %905 = vmatpush1.bf16.msra.mxu0 0
  %906 = vmatprep.subr.bf16.mxu0 0
  %907 = vmatpush1.bf16.msra.mxu0 0
  %908 = vmatprep.subr.bf16.mxu0 0
  %909 = vmatpush1.bf16.msra.mxu0 0
  %910 = vmatprep.subr.bf16.mxu0 0
  %911 = vmatpush1.bf16.msra.mxu0 0
  %912 = vmatprep.subr.bf16.mxu0 0
  %913 = vmatpush1.bf16.msra.mxu0 0
  %914 = vmatprep.subr.bf16.mxu0 0
  %915 = vmatpush1.bf16.msra.mxu0 0
  %916 = vmatprep.subr.bf16.mxu0 0
  %917 = vmatpush1.bf16.msra.mxu0 0
  %918 = vmatprep.subr.bf16.mxu0 0
  %919 = vmatpush1.bf16.msra.mxu0 0
  %920 = vmatprep.subr.bf16.mxu0 0
  %921 = vmatpush1.bf16.msra.mxu0 0
  %922 = vmatprep.mubr.bf16.mxu0 0
  %923 = vmatmul.mubr.bf16.gmra.mrb[0].mxu0 %v888
  %v924 = vpop.f32.mrb[0].mxu0
  %v925 = vadd.f32 %v885, %v924
  %v926 = vpop.f32.mrb[0].mxu0
  %v927 = vpop.f32.mrb[0].mxu0
  %v928 = vadd.f32 %v885, %v927
  %v929 = vpop.f32.mrb[0].mxu0
  %930 = vdwg.mxu0
  %v931 = vld [vmem:[%s3] sm:$0xf]
  %v932 = vld [vmem:[%s3 + $0x4] sm:$0xf]
  %v933 = vpack.c.bf16 %v928, %v925
  %v936 = vunpack.c.l.b16 %v931
  %v937 = vunpack.c.l.b16 %v932
  %v938 = vpack.c.b16 %v937, %v936
  %940 = vxpose.xlu0.c.b16.start [1/8] %v938, 128
  %941 = vxpose.xlu0.c.b16.cont [2/8] 0, 128
  %942 = vxpose.xlu0.c.b16.cont [3/8] 0, 128
  %943 = vxpose.xlu0.c.b16.cont [4/8] 0, 128
  %944 = vxpose.xlu0.c.b16.cont [5/8] 0, 128
  %945 = vxpose.xlu0.c.b16.cont [6/8] 0, 128
  %946 = vxpose.xlu0.c.b16.cont [7/8] 0, 128
  %947 = vxpose.xlu0.c.b16.end [8/8] 0, 128
  %v948 = vpop.trf.xlu0
  %v949 = vpop.trf.xlu0
  %v950 = vpop.trf.xlu0
  %v951 = vpop.trf.xlu0
  %v952 = vpop.trf.xlu0
  %v953 = vpop.trf.xlu0
  %v954 = vpop.trf.xlu0
  %v955 = vpop.trf.xlu0
  %v957 = vsel %vm62, %v948, 0
  %959 = vmatprep.subr.bf16.mxu0 0
  %960 = vmatpush1.bf16.msra.mxu0 %v933
  %961 = vmatprep.subr.bf16.mxu0 0
  %962 = vmatpush1.bf16.msra.mxu0 0
  %963 = vmatprep.subr.bf16.mxu0 0
  %964 = vmatpush1.bf16.msra.mxu0 0
  %965 = vmatprep.subr.bf16.mxu0 0
  %966 = vmatpush1.bf16.msra.mxu0 0
  %967 = vmatprep.subr.bf16.mxu0 0
  %968 = vmatpush1.bf16.msra.mxu0 0
  %969 = vmatprep.subr.bf16.mxu0 0
  %970 = vmatpush1.bf16.msra.mxu0 0
  %971 = vmatprep.subr.bf16.mxu0 0
  %972 = vmatpush1.bf16.msra.mxu0 0
  %973 = vmatprep.subr.bf16.mxu0 0
  %974 = vmatpush1.bf16.msra.mxu0 0
  %975 = vmatprep.subr.bf16.mxu0 0
  %976 = vmatpush1.bf16.msra.mxu0 0
  %977 = vmatprep.subr.bf16.mxu0 0
  %978 = vmatpush1.bf16.msra.mxu0 0
  %979 = vmatprep.subr.bf16.mxu0 0
  %980 = vmatpush1.bf16.msra.mxu0 0
  %981 = vmatprep.subr.bf16.mxu0 0
  %982 = vmatpush1.bf16.msra.mxu0 0
  %983 = vmatprep.subr.bf16.mxu0 0
  %984 = vmatpush1.bf16.msra.mxu0 0
  %985 = vmatprep.subr.bf16.mxu0 0
  %986 = vmatpush1.bf16.msra.mxu0 0
  %987 = vmatprep.subr.bf16.mxu0 0
  %988 = vmatpush1.bf16.msra.mxu0 0
  %989 = vmatprep.subr.bf16.mxu0 0
  %990 = vmatpush1.bf16.msra.mxu0 0
  %991 = vmatprep.mubr.bf16.mxu0 0
  %992 = vmatmul.mubr.bf16.gmra.mrb[0].mxu0 %v957
  %v993 = vpop.f32.mrb[0].mxu0
  %v994 = vadd.f32 0.0, %v993
  %v995 = vpop.f32.mrb[0].mxu0
  %v996 = vpop.f32.mrb[0].mxu0
  %v997 = vpop.f32.mrb[0].mxu0
  %998 = vdwg.mxu0
  %v999 = vld [vmem:[%s5] sm:$0x3]
  %1001 = vset.pattern.permute.xlu0 0
  %1002 = vperm.xlu0 %1001, %v999
  %v1003 = vpop.permute.xlu0 %1002
  %v1005 = vmul.f32 %v994, %v1003
  %v1006 = vpack.c.bf16 %v1005, %v1005
  %v1007 = vld [vmem:[%s9] sm:$0xff]
  %v1008 = vld [vmem:[%s9 + $0xc] sm:$0xff]
  %v1009 = vld [vmem:[%s9 + $0x18] sm:$0xff]
  %v1010 = vld [vmem:[%s9 + $0x24] sm:$0xff]
  %v1015 = vunpack.c.l.b16 %v1007
  %v1016 = vunpack.c.h.b16 %v1007
  %v1017 = vunpack.c.l.b16 %v1008
  %v1018 = vunpack.c.h.b16 %v1008
  %v1019 = vunpack.c.l.b16 %v1009
  %v1020 = vunpack.c.h.b16 %v1009
  %v1021 = vunpack.c.l.b16 %v1010
  %v1022 = vunpack.c.h.b16 %v1010
  %v1023 = vpack.c.b16 %v1017, %v1015
  %v1024 = vpack.c.b16 %v1018, %v1016
  %v1025 = vpack.c.b16 %v1021, %v1019
  %v1026 = vpack.c.b16 %v1022, %v1020
  %1027 = vrot.lane.b32.xlu0 %v1023, 32
  %v1028 = vpop.permute.xlu0 %1027
  %1029 = vrot.lane.b32.xlu0 %v1024, 32
  %v1030 = vpop.permute.xlu0 %1029
  %1031 = vrot.lane.b32.xlu0 %v1025, 32
  %v1032 = vpop.permute.xlu0 %1031
  %1033 = vrot.lane.b32.xlu0 %v1026, 32
  %v1034 = vpop.permute.xlu0 %1033
  %vm1035 = vcmask 261120
  %v1036 = vsel %vm1035, %v1028, %v1030
  %v1037 = vsel %vm1035, %v1032, %v1034
  %v1041 = vsel %vm435, %v1006, 0
  %1043 = vmatprep.subr.bf16.mxu0 0
  %1044 = vmatpush1.bf16.msra.mxu0 %v1036
  %1045 = vmatprep.subr.bf16.mxu0 0
  %1046 = vmatpush1.bf16.msra.mxu0 %v1037
  %1047 = vmatprep.subr.bf16.mxu0 0
  %1048 = vmatpush1.bf16.msra.mxu0 0
  %1049 = vmatprep.subr.bf16.mxu0 0
  %1050 = vmatpush1.bf16.msra.mxu0 0
  %1051 = vmatprep.subr.bf16.mxu0 0
  %1052 = vmatpush1.bf16.msra.mxu0 0
  %1053 = vmatprep.subr.bf16.mxu0 0
  %1054 = vmatpush1.bf16.msra.mxu0 0
  %1055 = vmatprep.subr.bf16.mxu0 0
  %1056 = vmatpush1.bf16.msra.mxu0 0
  %1057 = vmatprep.subr.bf16.mxu0 0
  %1058 = vmatpush1.bf16.msra.mxu0 0
  %1059 = vmatprep.subr.bf16.mxu0 0
  %1060 = vmatpush1.bf16.msra.mxu0 0
  %1061 = vmatprep.subr.bf16.mxu0 0
  %1062 = vmatpush1.bf16.msra.mxu0 0
  %1063 = vmatprep.subr.bf16.mxu0 0
  %1064 = vmatpush1.bf16.msra.mxu0 0
  %1065 = vmatprep.subr.bf16.mxu0 0
  %1066 = vmatpush1.bf16.msra.mxu0 0
  %1067 = vmatprep.subr.bf16.mxu0 0
  %1068 = vmatpush1.bf16.msra.mxu0 0
  %1069 = vmatprep.subr.bf16.mxu0 0
  %1070 = vmatpush1.bf16.msra.mxu0 0
  %1071 = vmatprep.subr.bf16.mxu0 0
  %1072 = vmatpush1.bf16.msra.mxu0 0
  %1073 = vmatprep.subr.bf16.mxu0 0
  %1074 = vmatpush1.bf16.msra.mxu0 0
  %1075 = vmatprep.mubr.bf16.mxu0 0
  %1076 = vmatmul.mubr.bf16.gmra.mrb[0].mxu0 %v1041
  %v1077 = vpop.f32.mrb[0].mxu0
  %v1078 = vadd.f32 0.0, %v1077
  %v1079 = vpop.f32.mrb[0].mxu0
  %v1080 = vpop.f32.mrb[0].mxu0
  %v1081 = vpop.f32.mrb[0].mxu0
  %1082 = vdwg.mxu0
  %v1083 = vld [vmem:[%s10 + $0x2] sm:$0x1]
  %v1085 = vlaneseq
  %v1086 = vshrl.u32 %v1085, 7
  %v1087 = vsub.s32 0, %v1086
  %v1088 = vrot.slane %v1083, %v1087
  %v1090 = vadd.f32 %v1078, %v1088
  %v1091 = vmax.f32 %v1090, 0.0
  %vm1092 = vcmp.ne.f32.partialorder %v1090, %v1090
  %v1093 = vadd.f32 %v1090, 0.0
  %v1094 = vand.u32 2147483647, %v1090
  %v1095 = vsub.f32 0.0, %v1094
  %v1096 = vmul.f32 %v1095, 1.442695
  %v1097 = vpow.pop %v1096
  %v1098 = vadd.f32 %v1097, 1.0
  %v1099 = vlog2.pop %v1098
  %v1100 = vmul.f32 %v1099, 0.6931472
  %v1101 = vmul.f32 -0.5, %v1097
  %v1102 = vadd.f32 %v1101, 1.0
  %v1103 = vmul.f32 %v1102, %v1097
  %v1104 = vand.u32 2147483647, %v1097
  %vm1105 = vcmp.lt.f32.partialorder %v1104, 0.0004427343
  %v1106 = vsel %vm1105, %v1103, %v1100
  %v1107 = vadd.f32 %v1091, %v1106
  %v1108 = vsel %vm1092, %v1093, %v1107
  %v1109 = vadd.f32 %v1108, 1e-06
  %v1110 = vld [vmem:[%s6] sm:$0x3]
  %1112 = vrot.lane.b32.xlu0 %v1110, 32
  %v1113 = vpop.permute.xlu0 %1112
  %v1115 = vmul.f32 %v1109, %v1113
  %1117 = vrot.lane.b32.xlu0 %v1115, 96
  %v1118 = vpop.permute.xlu0 %1117
  %v1120 = vadd.f32 %v1090, %v1118
  %1122 = vrot.lane.b32.xlu0 %v1120, 64
  %v1123 = vpop.permute.xlu0 %1122
  %v1125 = vsel %vm435, %v1090, %v1109
  %v1126 = vsel %vm494, %v1125, %v1123
  %vm1127 = vcmask 785408
  %v1128 = vsel %vm1127, %v1126, 0.0
  %1129 = vst [vmem:[%s11] sm:$0x3] %v1128
  %v1130 = vld [vmem:[%s3] sm:$0xf]
  %v1131 = vld [vmem:[%s3 + $0x4] sm:$0xf]
  %v1132 = vunpack.c.l.bf16 %v1130
  %v1133 = vunpack.c.l.bf16 %v1131
  %vm1134 = vcmask 15360
  %v1136 = vsel %vm1134, %v1132, 0
  %v1139 = vsel %vm1134, %v1133, 0
  %vm1141 = vcmask 1041408
  %v1142 = vsel %vm1141, %v1120, 0
  %1144 = vmatprep.subr.mxu0 0.0
  %1145 = vmatpush1.msra.mxu0 %v1142
  %1146 = vmatprep.subr.mxu0 0.0
  %1147 = vmatpush1.msra.mxu0 0.0
  %1148 = vmatprep.subr.mxu0 0.0
  %1149 = vmatpush1.msra.mxu0 0.0
  %1150 = vmatprep.subr.mxu0 0.0
  %1151 = vmatpush1.msra.mxu0 0.0
  %1152 = vmatprep.subr.mxu0 0.0
  %1153 = vmatpush1.msra.mxu0 0.0
  %1154 = vmatprep.subr.mxu0 0.0
  %1155 = vmatpush1.msra.mxu0 0.0
  %1156 = vmatprep.subr.mxu0 0.0
  %1157 = vmatpush1.msra.mxu0 0.0
  %1158 = vmatprep.subr.mxu0 0.0
  %1159 = vmatpush1.msra.mxu0 0.0
  %1160 = vmatprep.subr.mxu0 0.0
  %1161 = vmatpush1.msra.mxu0 0.0
  %1162 = vmatprep.subr.mxu0 0.0
  %1163 = vmatpush1.msra.mxu0 0.0
  %1164 = vmatprep.subr.mxu0 0.0
  %1165 = vmatpush1.msra.mxu0 0.0
  %1166 = vmatprep.subr.mxu0 0.0
  %1167 = vmatpush1.msra.mxu0 0.0
  %1168 = vmatprep.subr.mxu0 0.0
  %1169 = vmatpush1.msra.mxu0 0.0
  %1170 = vmatprep.subr.mxu0 0.0
  %1171 = vmatpush1.msra.mxu0 0.0
  %1172 = vmatprep.subr.mxu0 0.0
  %1173 = vmatpush1.msra.mxu0 0.0
  %1174 = vmatprep.subr.mxu0 0.0
  %1175 = vmatpush1.msra.mxu0 0.0
  %1176 = vmatprep.subr.mxu0 0.0
  %1177 = vmatpush1.msra.mxu0 0.0
  %1178 = vmatprep.subr.mxu0 0.0
  %1179 = vmatpush1.msra.mxu0 0.0
  %1180 = vmatprep.subr.mxu0 0.0
  %1181 = vmatpush1.msra.mxu0 0.0
  %1182 = vmatprep.subr.mxu0 0.0
  %1183 = vmatpush1.msra.mxu0 0.0
  %1184 = vmatprep.subr.mxu0 0.0
  %1185 = vmatpush1.msra.mxu0 0.0
  %1186 = vmatprep.subr.mxu0 0.0
  %1187 = vmatpush1.msra.mxu0 0.0
  %1188 = vmatprep.subr.mxu0 0.0
  %1189 = vmatpush1.msra.mxu0 0.0
  %1190 = vmatprep.subr.mxu0 0.0
  %1191 = vmatpush1.msra.mxu0 0.0
  %1192 = vmatprep.subr.mxu0 0.0
  %1193 = vmatpush1.msra.mxu0 0.0
  %1194 = vmatprep.subr.mxu0 0.0
  %1195 = vmatpush1.msra.mxu0 0.0
  %1196 = vmatprep.subr.mxu0 0.0
  %1197 = vmatpush1.msra.mxu0 0.0
  %1198 = vmatprep.subr.mxu0 0.0
  %1199 = vmatpush1.msra.mxu0 0.0
  %1200 = vmatprep.subr.mxu0 0.0
  %1201 = vmatpush1.msra.mxu0 0.0
  %1202 = vmatprep.subr.mxu0 0.0
  %1203 = vmatpush1.msra.mxu0 0.0
  %1204 = vmatprep.subr.mxu0 0.0
  %1205 = vmatpush1.msra.mxu0 0.0
  %1206 = vmatprep.subr.mxu0 0.0
  %1207 = vmatpush1.msra.mxu0 0.0
  %1208 = vmatprep.mubr.f32.mxu0 0.0
  %1209 = vmatmul.mubr.f32.gmra.mrb[0].mxu0 %v1136
  %v1210 = vpop.f32.mrb[0].mxu0
  %v1211 = vadd.f32 0.0, %v1210
  %v1212 = vpop.f32.mrb[0].mxu0
  %1213 = vmatprep.mubr.f32.mxu0 0.0
  %1214 = vmatmul.mubr.f32.gmra.mrb[0].mxu0 %v1139
  %v1215 = vpop.f32.mrb[0].mxu0
  %v1216 = vadd.f32 0.0, %v1215
  %v1217 = vpop.f32.mrb[0].mxu0
  %1218 = vdwg.mxu0
  %v1219 = vld [vmem:[%s10 + $0x2] sm:$0x1]
  %v1221 = vlaneseq
  %v1222 = vshrl.u32 %v1221, 7
  %v1223 = vsub.s32 0, %v1222
  %v1224 = vrot.slane %v1219, %v1223
  %v1226 = vmul.f32 %v301, %v1224
  %v1227 = vmul.f32 %v306, %v1224
  %v1228 = vpack.c.bf16 %v1216, %v1211
  %v1229 = vld [vmem:[%s9 + $0x4] sm:$0xf]
  %v1230 = vld [vmem:[%s9 + $0x10] sm:$0xf]
  %v1231 = vld [vmem:[%s9 + $0x1c] sm:$0xf]
  %v1232 = vld [vmem:[%s9 + $0x28] sm:$0xf]
  %v1237 = vunpack.c.l.b16 %v1229
  %v1238 = vunpack.c.l.b16 %v1230
  %v1239 = vunpack.c.l.b16 %v1231
  %v1240 = vunpack.c.l.b16 %v1232
  %v1241 = vpack.c.b16 %v1238, %v1237
  %v1242 = vpack.c.b16 %v1240, %v1239
  %1243 = vrot.lane.b32.xlu0 %v1241, 96
  %v1244 = vpop.permute.xlu0 %1243
  %1245 = vrot.lane.b32.xlu0 %v1242, 96
  %v1246 = vpop.permute.xlu0 %1245
  %v1250 = vsel %vm435, %v1228, 0
  %1252 = vmatprep.subr.bf16.mxu0 0
  %1253 = vmatpush1.bf16.msra.mxu0 %v1244
  %1254 = vmatprep.subr.bf16.mxu0 0
  %1255 = vmatpush1.bf16.msra.mxu0 %v1246
  %1256 = vmatprep.subr.bf16.mxu0 0
  %1257 = vmatpush1.bf16.msra.mxu0 0
  %1258 = vmatprep.subr.bf16.mxu0 0
  %1259 = vmatpush1.bf16.msra.mxu0 0
  %1260 = vmatprep.subr.bf16.mxu0 0
  %1261 = vmatpush1.bf16.msra.mxu0 0
  %1262 = vmatprep.subr.bf16.mxu0 0
  %1263 = vmatpush1.bf16.msra.mxu0 0
  %1264 = vmatprep.subr.bf16.mxu0 0
  %1265 = vmatpush1.bf16.msra.mxu0 0
  %1266 = vmatprep.subr.bf16.mxu0 0
  %1267 = vmatpush1.bf16.msra.mxu0 0
  %1268 = vmatprep.subr.bf16.mxu0 0
  %1269 = vmatpush1.bf16.msra.mxu0 0
  %1270 = vmatprep.subr.bf16.mxu0 0
  %1271 = vmatpush1.bf16.msra.mxu0 0
  %1272 = vmatprep.subr.bf16.mxu0 0
  %1273 = vmatpush1.bf16.msra.mxu0 0
  %1274 = vmatprep.subr.bf16.mxu0 0
  %1275 = vmatpush1.bf16.msra.mxu0 0
  %1276 = vmatprep.subr.bf16.mxu0 0
  %1277 = vmatpush1.bf16.msra.mxu0 0
  %1278 = vmatprep.subr.bf16.mxu0 0
  %1279 = vmatpush1.bf16.msra.mxu0 0
  %1280 = vmatprep.subr.bf16.mxu0 0
  %1281 = vmatpush1.bf16.msra.mxu0 0
  %1282 = vmatprep.subr.bf16.mxu0 0
  %1283 = vmatpush1.bf16.msra.mxu0 0
  %1284 = vmatprep.mubr.bf16.mxu0 0
  %1285 = vmatmul.mubr.bf16.gmra.mrb[0].mxu0 %v1250
  %v1286 = vpop.f32.mrb[0].mxu0
  %v1287 = vadd.f32 0.0, %v1286
  %v1288 = vpop.f32.mrb[0].mxu0
  %v1289 = vpop.f32.mrb[0].mxu0
  %v1290 = vadd.f32 0.0, %v1289
  %v1291 = vpop.f32.mrb[0].mxu0
  %1292 = vdwg.mxu0
  %1295 = vrot.lane.b32.xlu0 %v1287, 64
  %v1296 = vpop.permute.xlu0 %1295
  %1297 = vrot.lane.b32.xlu0 %v1290, 64
  %v1298 = vpop.permute.xlu0 %1297
  %v1301 = vadd.f32 %v1226, %v1296
  %v1302 = vadd.f32 %v1227, %v1298
  %1303 = vrot.lane.b32.xlu0 %v1224, 96
  %v1304 = vpop.permute.xlu0 %1303
  %v1306 = vadd.f32 %v1301, %v1304
  %v1307 = vadd.f32 %v1302, %v1304
  %v1308 = vpack.c.bf16 %v1307, %v1306
  %v1309 = vld [vmem:[%s10 + $0x3] sm:$0x1]
  %v1311 = vlaneseq
  %v1312 = vshrl.u32 %v1311, 7
  %v1313 = vsub.s32 0, %v1312
  %v1314 = vrot.slane %v1309, %v1313
  %1317 = vrot.lane.b32.xlu0 %v1308, 64
  %v1318 = vpop.permute.xlu0 %1317
  %1319 = vrot.lane.b32.xlu0 %v1241, 64
  %v1320 = vpop.permute.xlu0 %1319
  %1321 = vrot.lane.b32.xlu0 %v1242, 64
  %v1322 = vpop.permute.xlu0 %1321
  %v1326 = vsel %vm435, %v1318, 0
  %1328 = vmatprep.subr.bf16.mxu0 0
  %1329 = vmatpush1.bf16.msra.mxu0 %v1320
  %1330 = vmatprep.subr.bf16.mxu0 0
  %1331 = vmatpush1.bf16.msra.mxu0 %v1322
  %1332 = vmatprep.subr.bf16.mxu0 0
  %1333 = vmatpush1.bf16.msra.mxu0 0
  %1334 = vmatprep.subr.bf16.mxu0 0
  %1335 = vmatpush1.bf16.msra.mxu0 0
  %1336 = vmatprep.subr.bf16.mxu0 0
  %1337 = vmatpush1.bf16.msra.mxu0 0
  %1338 = vmatprep.subr.bf16.mxu0 0
  %1339 = vmatpush1.bf16.msra.mxu0 0
  %1340 = vmatprep.subr.bf16.mxu0 0
  %1341 = vmatpush1.bf16.msra.mxu0 0
  %1342 = vmatprep.subr.bf16.mxu0 0
  %1343 = vmatpush1.bf16.msra.mxu0 0
  %1344 = vmatprep.subr.bf16.mxu0 0
  %1345 = vmatpush1.bf16.msra.mxu0 0
  %1346 = vmatprep.subr.bf16.mxu0 0
  %1347 = vmatpush1.bf16.msra.mxu0 0
  %1348 = vmatprep.subr.bf16.mxu0 0
  %1349 = vmatpush1.bf16.msra.mxu0 0
  %1350 = vmatprep.subr.bf16.mxu0 0
  %1351 = vmatpush1.bf16.msra.mxu0 0
  %1352 = vmatprep.subr.bf16.mxu0 0
  %1353 = vmatpush1.bf16.msra.mxu0 0
  %1354 = vmatprep.subr.bf16.mxu0 0
  %1355 = vmatpush1.bf16.msra.mxu0 0
  %1356 = vmatprep.subr.bf16.mxu0 0
  %1357 = vmatpush1.bf16.msra.mxu0 0
  %1358 = vmatprep.subr.bf16.mxu0 0
  %1359 = vmatpush1.bf16.msra.mxu0 0
  %1360 = vmatprep.mubr.bf16.mxu0 0
  %1361 = vmatmul.mubr.bf16.gmra.mrb[0].mxu0 %v1326
  %v1362 = vpop.f32.mrb[0].mxu0
  %v1363 = vadd.f32 %v1314, %v1362
  %v1364 = vpop.f32.mrb[0].mxu0
  %v1365 = vpop.f32.mrb[0].mxu0
  %v1366 = vadd.f32 %v1314, %v1365
  %v1367 = vpop.f32.mrb[0].mxu0
  %1368 = vdwg.mxu0
  %v1369 = vpack.c.bf16 %v1366, %v1363
  %1370 = vmatprep.subr.bf16.mxu0 0
  %1371 = vmatpush1.bf16.msra.mxu0 %v1369
  %1372 = vmatprep.subr.bf16.mxu0 0
  %1373 = vmatpush1.bf16.msra.mxu0 0
  %1374 = vmatprep.subr.bf16.mxu0 0
  %1375 = vmatpush1.bf16.msra.mxu0 0
  %1376 = vmatprep.subr.bf16.mxu0 0
  %1377 = vmatpush1.bf16.msra.mxu0 0
  %1378 = vmatprep.subr.bf16.mxu0 0
  %1379 = vmatpush1.bf16.msra.mxu0 0
  %1380 = vmatprep.subr.bf16.mxu0 0
  %1381 = vmatpush1.bf16.msra.mxu0 0
  %1382 = vmatprep.subr.bf16.mxu0 0
  %1383 = vmatpush1.bf16.msra.mxu0 0
  %1384 = vmatprep.subr.bf16.mxu0 0
  %1385 = vmatpush1.bf16.msra.mxu0 0
  %1386 = vmatprep.subr.bf16.mxu0 0
  %1387 = vmatpush1.bf16.msra.mxu0 0
  %1388 = vmatprep.subr.bf16.mxu0 0
  %1389 = vmatpush1.bf16.msra.mxu0 0
  %1390 = vmatprep.subr.bf16.mxu0 0
  %1391 = vmatpush1.bf16.msra.mxu0 0
  %1392 = vmatprep.subr.bf16.mxu0 0
  %1393 = vmatpush1.bf16.msra.mxu0 0
  %1394 = vmatprep.subr.bf16.mxu0 0
  %1395 = vmatpush1.bf16.msra.mxu0 0
  %1396 = vmatprep.subr.bf16.mxu0 0
  %1397 = vmatpush1.bf16.msra.mxu0 0
  %1398 = vmatprep.subr.bf16.mxu0 0
  %1399 = vmatpush1.bf16.msra.mxu0 0
  %1400 = vmatprep.subr.bf16.mxu0 0
  %1401 = vmatpush1.bf16.msra.mxu0 0
  %1402 = vmatprep.mubr.bf16.mxu0 0
  %1403 = vmatmul.mubr.bf16.gmra.mrb[0].mxu0 %v343
  %v1404 = vpop.f32.mrb[0].mxu0
  %v1405 = vadd.f32 0.0, %v1404
  %v1406 = vpop.f32.mrb[0].mxu0
  %v1407 = vpop.f32.mrb[0].mxu0
  %v1408 = vadd.f32 0.0, %v1407
  %v1409 = vpop.f32.mrb[0].mxu0
  %1410 = vmatprep.mubr.bf16.mxu0 0
  %1411 = vmatmul.mubr.bf16.gmra.mrb[0].mxu0 %v346
  %v1412 = vpop.f32.mrb[0].mxu0
  %v1413 = vadd.f32 0.0, %v1412
  %v1414 = vpop.f32.mrb[0].mxu0
  %v1415 = vpop.f32.mrb[0].mxu0
  %v1416 = vadd.f32 0.0, %v1415
  %v1417 = vpop.f32.mrb[0].mxu0
  %1418 = vmatprep.mubr.bf16.mxu0 0
  %1419 = vmatmul.mubr.bf16.gmra.mrb[0].mxu0 %v349
  %v1420 = vpop.f32.mrb[0].mxu0
  %v1421 = vadd.f32 0.0, %v1420
  %v1422 = vpop.f32.mrb[0].mxu0
  %v1423 = vpop.f32.mrb[0].mxu0
  %v1424 = vadd.f32 0.0, %v1423
  %v1425 = vpop.f32.mrb[0].mxu0
  %1426 = vmatprep.mubr.bf16.mxu0 0
  %1427 = vmatmul.mubr.bf16.gmra.mrb[0].mxu0 %v352
  %v1428 = vpop.f32.mrb[0].mxu0
  %v1429 = vadd.f32 0.0, %v1428
  %v1430 = vpop.f32.mrb[0].mxu0
  %v1431 = vpop.f32.mrb[0].mxu0
  %v1432 = vadd.f32 0.0, %v1431
  %v1433 = vpop.f32.mrb[0].mxu0
  %1434 = vdwg.mxu0
  %1439 = vrot.lane.b32.xlu0 %v1421, 32
  %v1440 = vpop.permute.xlu0 %1439
  %1441 = vrot.lane.b32.xlu0 %v1424, 32
  %v1442 = vpop.permute.xlu0 %1441
  %1443 = vrot.lane.b32.xlu0 %v1429, 32
  %v1444 = vpop.permute.xlu0 %1443
  %1445 = vrot.lane.b32.xlu0 %v1432, 32
  %v1446 = vpop.permute.xlu0 %1445
  %v1451 = vsel %vm435, %v1405, %v1440
  %v1452 = vsel %vm435, %v1408, %v1442
  %v1453 = vsel %vm435, %v1413, %v1444
  %v1454 = vsel %vm435, %v1416, %v1446
  %v1455 = vpack.c.bf16 %v1452, %v1451
  %v1456 = vpack.c.bf16 %v1454, %v1453
  %v1457 = vld [vmem:[%s8] sm:$0xf]
  %v1458 = vld [vmem:[%s8 + $0x4] sm:$0xf]
  %v1459 = vld [vmem:[%s8 + $0x8] sm:$0xf]
  %v1460 = vld [vmem:[%s8 + $0xc] sm:$0xf]
  %v1461 = vld [vmem:[%s8 + $0x10] sm:$0xf]
  %v1462 = vld [vmem:[%s8 + $0x14] sm:$0xf]
  %v1463 = vld [vmem:[%s8 + $0x18] sm:$0xf]
  %v1464 = vld [vmem:[%s8 + $0x1c] sm:$0xf]
  %v1465 = vmul.f32 %v247, %v1314
  %v1466 = vmul.f32 %v250, %v1314
  %v1467 = vmul.f32 %v253, %v1314
  %v1468 = vmul.f32 %v256, %v1314
  %v1477 = vunpack.c.l.b16 %v1457
  %v1478 = vunpack.c.l.b16 %v1458
  %v1479 = vunpack.c.l.b16 %v1459
  %v1480 = vunpack.c.l.b16 %v1460
  %v1481 = vunpack.c.l.b16 %v1461
  %v1482 = vunpack.c.l.b16 %v1462
  %v1483 = vunpack.c.l.b16 %v1463
  %v1484 = vunpack.c.l.b16 %v1464
  %v1485 = vpack.c.b16 %v1478, %v1477
  %v1486 = vpack.c.b16 %v1480, %v1479
  %v1487 = vpack.c.b16 %v1482, %v1481
  %v1488 = vpack.c.b16 %v1484, %v1483
  %1489 = vrot.lane.b32.xlu0 %v1485, 64
  %v1490 = vpop.permute.xlu0 %1489
  %1491 = vrot.lane.b32.xlu0 %v1486, 64
  %v1492 = vpop.permute.xlu0 %1491
  %1493 = vrot.lane.b32.xlu0 %v1487, 64
  %v1494 = vpop.permute.xlu0 %1493
  %1495 = vrot.lane.b32.xlu0 %v1488, 64
  %v1496 = vpop.permute.xlu0 %1495
  %1505 = vrot.lane.b32.xlu0 %v1465, 96
  %v1506 = vpop.permute.xlu0 %1505
  %1507 = vrot.lane.b32.xlu0 %v1466, 96
  %v1508 = vpop.permute.xlu0 %1507
  %1509 = vrot.lane.b32.xlu0 %v1467, 96
  %v1510 = vpop.permute.xlu0 %1509
  %1511 = vrot.lane.b32.xlu0 %v1468, 96
  %v1512 = vpop.permute.xlu0 %1511
  %v1518 = vsel %vm494, %v1455, 0
  %v1521 = vsel %vm494, %v1456, 0
  %1523 = vmatprep.subr.bf16.mxu0 0
  %1524 = vmatpush1.bf16.msra.mxu0 %v1490
  %1525 = vmatprep.subr.bf16.mxu0 0
  %1526 = vmatpush1.bf16.msra.mxu0 %v1492
  %1527 = vmatprep.subr.bf16.mxu0 0
  %1528 = vmatpush1.bf16.msra.mxu0 %v1494
  %1529 = vmatprep.subr.bf16.mxu0 0
  %1530 = vmatpush1.bf16.msra.mxu0 %v1496
  %1531 = vmatprep.subr.bf16.mxu0 0
  %1532 = vmatpush1.bf16.msra.mxu0 0
  %1533 = vmatprep.subr.bf16.mxu0 0
  %1534 = vmatpush1.bf16.msra.mxu0 0
  %1535 = vmatprep.subr.bf16.mxu0 0
  %1536 = vmatpush1.bf16.msra.mxu0 0
  %1537 = vmatprep.subr.bf16.mxu0 0
  %1538 = vmatpush1.bf16.msra.mxu0 0
  %1539 = vmatprep.subr.bf16.mxu0 0
  %1540 = vmatpush1.bf16.msra.mxu0 0
  %1541 = vmatprep.subr.bf16.mxu0 0
  %1542 = vmatpush1.bf16.msra.mxu0 0
  %1543 = vmatprep.subr.bf16.mxu0 0
  %1544 = vmatpush1.bf16.msra.mxu0 0
  %1545 = vmatprep.subr.bf16.mxu0 0
  %1546 = vmatpush1.bf16.msra.mxu0 0
  %1547 = vmatprep.subr.bf16.mxu0 0
  %1548 = vmatpush1.bf16.msra.mxu0 0
  %1549 = vmatprep.subr.bf16.mxu0 0
  %1550 = vmatpush1.bf16.msra.mxu0 0
  %1551 = vmatprep.subr.bf16.mxu0 0
  %1552 = vmatpush1.bf16.msra.mxu0 0
  %1553 = vmatprep.subr.bf16.mxu0 0
  %1554 = vmatpush1.bf16.msra.mxu0 0
  %1555 = vmatprep.mubr.bf16.mxu0 0
  %1556 = vmatmul.mubr.bf16.gmra.mrb[0].mxu0 %v1518
  %v1557 = vpop.f32.mrb[0].mxu0
  %v1558 = vadd.f32 %v1506, %v1557
  %v1559 = vpop.f32.mrb[0].mxu0
  %v1560 = vpop.f32.mrb[0].mxu0
  %v1561 = vadd.f32 %v1508, %v1560
  %v1562 = vpop.f32.mrb[0].mxu0
  %1563 = vmatprep.mubr.bf16.mxu0 0
  %1564 = vmatmul.mubr.bf16.gmra.mrb[0].mxu0 %v1521
  %v1565 = vpop.f32.mrb[0].mxu0
  %v1566 = vadd.f32 %v1510, %v1565
  %v1567 = vpop.f32.mrb[0].mxu0
  %v1568 = vpop.f32.mrb[0].mxu0
  %v1569 = vadd.f32 %v1512, %v1568
  %v1570 = vpop.f32.mrb[0].mxu0
  %1571 = vdwg.mxu0
  %1572 = vrot.lane.b32.xlu0 %v1314, 64
  %v1573 = vpop.permute.xlu0 %1572
  %v1575 = vadd.f32 %v1558, %v1573
  %v1576 = vadd.f32 %v1561, %v1573
  %v1577 = vadd.f32 %v1566, %v1573
  %v1578 = vadd.f32 %v1569, %v1573
  %v1579 = vmul.f32 %v1575, 0.5
  %v1580 = vmul.f32 %v1576, 0.5
  %v1581 = vmul.f32 %v1577, 0.5
  %v1582 = vmul.f32 %v1578, 0.5
  %v1583 = vtanh.pop %v1579
  %v1584 = vtanh.pop %v1580
  %v1585 = vtanh.pop %v1581
  %v1586 = vtanh.pop %v1582
  %v1587 = vmul.f32 %v1583, 0.5
  %v1588 = vmul.f32 %v1584, 0.5
  %v1589 = vmul.f32 %v1585, 0.5
  %v1590 = vmul.f32 %v1586, 0.5
  %v1591 = vadd.f32 %v1587, 0.5
  %v1592 = vadd.f32 %v1588, 0.5
  %v1593 = vadd.f32 %v1589, 0.5
  %v1594 = vadd.f32 %v1590, 0.5
  %v1595 = vmul.f32 %v1575, %v1591
  %v1596 = vmul.f32 %v1576, %v1592
  %v1597 = vmul.f32 %v1577, %v1593
  %v1598 = vmul.f32 %v1578, %v1594
  %v1599 = vpack.c.bf16 %v1596, %v1595
  %v1600 = vpack.c.bf16 %v1598, %v1597
  %1601 = vrot.lane.b32.xlu0 %v1241, 32
  %v1602 = vpop.permute.xlu0 %1601
  %1603 = vrot.lane.b32.xlu0 %v1242, 32
  %v1604 = vpop.permute.xlu0 %1603
  %1607 = vrot.lane.b32.xlu0 %v1314, 32
  %v1608 = vpop.permute.xlu0 %1607
  %v1611 = vsel %vm435, %v1599, 0
  %v1614 = vsel %vm435, %v1600, 0
  %1616 = vmatprep.subr.bf16.mxu0 0
  %1617 = vmatpush1.bf16.msra.mxu0 %v1602
  %1618 = vmatprep.subr.bf16.mxu0 0
  %1619 = vmatpush1.bf16.msra.mxu0 %v1604
  %1620 = vmatprep.subr.bf16.mxu0 0
  %1621 = vmatpush1.bf16.msra.mxu0 0
  %1622 = vmatprep.subr.bf16.mxu0 0
  %1623 = vmatpush1.bf16.msra.mxu0 0
  %1624 = vmatprep.subr.bf16.mxu0 0
  %1625 = vmatpush1.bf16.msra.mxu0 0
  %1626 = vmatprep.subr.bf16.mxu0 0
  %1627 = vmatpush1.bf16.msra.mxu0 0
  %1628 = vmatprep.subr.bf16.mxu0 0
  %1629 = vmatpush1.bf16.msra.mxu0 0
  %1630 = vmatprep.subr.bf16.mxu0 0
  %1631 = vmatpush1.bf16.msra.mxu0 0
  %1632 = vmatprep.subr.bf16.mxu0 0
  %1633 = vmatpush1.bf16.msra.mxu0 0
  %1634 = vmatprep.subr.bf16.mxu0 0
  %1635 = vmatpush1.bf16.msra.mxu0 0
  %1636 = vmatprep.subr.bf16.mxu0 0
  %1637 = vmatpush1.bf16.msra.mxu0 0
  %1638 = vmatprep.subr.bf16.mxu0 0
  %1639 = vmatpush1.bf16.msra.mxu0 0
  %1640 = vmatprep.subr.bf16.mxu0 0
  %1641 = vmatpush1.bf16.msra.mxu0 0
  %1642 = vmatprep.subr.bf16.mxu0 0
  %1643 = vmatpush1.bf16.msra.mxu0 0
  %1644 = vmatprep.subr.bf16.mxu0 0
  %1645 = vmatpush1.bf16.msra.mxu0 0
  %1646 = vmatprep.subr.bf16.mxu0 0
  %1647 = vmatpush1.bf16.msra.mxu0 0
  %1648 = vmatprep.mubr.bf16.mxu0 0
  %1649 = vmatmul.mubr.bf16.gmra.mrb[0].mxu0 %v1611
  %v1650 = vpop.f32.mrb[0].mxu0
  %v1651 = vadd.f32 %v1608, %v1650
  %v1652 = vpop.f32.mrb[0].mxu0
  %v1653 = vpop.f32.mrb[0].mxu0
  %v1654 = vadd.f32 %v1608, %v1653
  %v1655 = vpop.f32.mrb[0].mxu0
  %1656 = vmatprep.mubr.bf16.mxu0 0
  %1657 = vmatmul.mubr.bf16.gmra.mrb[0].mxu0 %v1614
  %v1658 = vpop.f32.mrb[0].mxu0
  %v1659 = vadd.f32 %v1608, %v1658
  %v1660 = vpop.f32.mrb[0].mxu0
  %v1661 = vpop.f32.mrb[0].mxu0
  %v1662 = vadd.f32 %v1608, %v1661
  %v1663 = vpop.f32.mrb[0].mxu0
  %1664 = vdwg.mxu0
  %v1665 = vmul.f32 %v1651, 0.5
  %v1666 = vmul.f32 %v1654, 0.5
  %v1667 = vmul.f32 %v1659, 0.5
  %v1668 = vmul.f32 %v1662, 0.5
  %v1669 = vtanh.pop %v1665
  %v1670 = vtanh.pop %v1666
  %v1671 = vtanh.pop %v1667
  %v1672 = vtanh.pop %v1668
  %v1673 = vmul.f32 %v1669, 0.5
  %v1674 = vmul.f32 %v1670, 0.5
  %v1675 = vmul.f32 %v1671, 0.5
  %v1676 = vmul.f32 %v1672, 0.5
  %v1677 = vadd.f32 %v1673, 0.5
  %v1678 = vadd.f32 %v1674, 0.5
  %v1679 = vadd.f32 %v1675, 0.5
  %v1680 = vadd.f32 %v1676, 0.5
  %v1681 = vmul.f32 %v1651, %v1677
  %v1682 = vmul.f32 %v1654, %v1678
  %v1683 = vmul.f32 %v1659, %v1679
  %v1684 = vmul.f32 %v1662, %v1680
  %v1685 = vpack.c.bf16 %v1682, %v1681
  %v1686 = vpack.c.bf16 %v1684, %v1683
  %v1687 = vld [vmem:[%s9 + $0x8] sm:$0xf]
  %v1688 = vld [vmem:[%s9 + $0x14] sm:$0xf]
  %v1689 = vld [vmem:[%s9 + $0x20] sm:$0xf]
  %v1690 = vld [vmem:[%s9 + $0x2c] sm:$0xf]
  %v1691 = vld [vmem:[%s10 + $0x4] sm:$0x1]
  %v1693 = vlaneseq
  %v1694 = vshrl.u32 %v1693, 7
  %v1695 = vsub.s32 0, %v1694
  %v1696 = vrot.slane %v1691, %v1695
  %v1702 = vunpack.c.l.b16 %v1687
  %v1703 = vunpack.c.l.b16 %v1688
  %v1704 = vunpack.c.l.b16 %v1689
  %v1705 = vunpack.c.l.b16 %v1690
  %v1706 = vpack.c.b16 %v1703, %v1702
  %v1707 = vpack.c.b16 %v1705, %v1704
  %v1711 = vsel %vm435, %v1685, 0
  %v1714 = vsel %vm435, %v1686, 0
  %1716 = vmatprep.subr.bf16.mxu0 0
  %1717 = vmatpush1.bf16.msra.mxu0 %v1706
  %1718 = vmatprep.subr.bf16.mxu0 0
  %1719 = vmatpush1.bf16.msra.mxu0 %v1707
  %1720 = vmatprep.subr.bf16.mxu0 0
  %1721 = vmatpush1.bf16.msra.mxu0 0
  %1722 = vmatprep.subr.bf16.mxu0 0
  %1723 = vmatpush1.bf16.msra.mxu0 0
  %1724 = vmatprep.subr.bf16.mxu0 0
  %1725 = vmatpush1.bf16.msra.mxu0 0
  %1726 = vmatprep.subr.bf16.mxu0 0
  %1727 = vmatpush1.bf16.msra.mxu0 0
  %1728 = vmatprep.subr.bf16.mxu0 0
  %1729 = vmatpush1.bf16.msra.mxu0 0
  %1730 = vmatprep.subr.bf16.mxu0 0
  %1731 = vmatpush1.bf16.msra.mxu0 0
  %1732 = vmatprep.subr.bf16.mxu0 0
  %1733 = vmatpush1.bf16.msra.mxu0 0
  %1734 = vmatprep.subr.bf16.mxu0 0
  %1735 = vmatpush1.bf16.msra.mxu0 0
  %1736 = vmatprep.subr.bf16.mxu0 0
  %1737 = vmatpush1.bf16.msra.mxu0 0
  %1738 = vmatprep.subr.bf16.mxu0 0
  %1739 = vmatpush1.bf16.msra.mxu0 0
  %1740 = vmatprep.subr.bf16.mxu0 0
  %1741 = vmatpush1.bf16.msra.mxu0 0
  %1742 = vmatprep.subr.bf16.mxu0 0
  %1743 = vmatpush1.bf16.msra.mxu0 0
  %1744 = vmatprep.subr.bf16.mxu0 0
  %1745 = vmatpush1.bf16.msra.mxu0 0
  %1746 = vmatprep.subr.bf16.mxu0 0
  %1747 = vmatpush1.bf16.msra.mxu0 0
  %1748 = vmatprep.mubr.bf16.mxu0 0
  %1749 = vmatmul.mubr.bf16.gmra.mrb[0].mxu0 %v1711
  %v1750 = vpop.f32.mrb[0].mxu0
  %v1751 = vadd.f32 %v1696, %v1750
  %v1752 = vpop.f32.mrb[0].mxu0
  %v1753 = vpop.f32.mrb[0].mxu0
  %v1754 = vadd.f32 %v1696, %v1753
  %v1755 = vpop.f32.mrb[0].mxu0
  %1756 = vmatprep.mubr.bf16.mxu0 0
  %1757 = vmatmul.mubr.bf16.gmra.mrb[0].mxu0 %v1714
  %v1758 = vpop.f32.mrb[0].mxu0
  %v1759 = vadd.f32 %v1696, %v1758
  %v1760 = vpop.f32.mrb[0].mxu0
  %v1761 = vpop.f32.mrb[0].mxu0
  %v1762 = vadd.f32 %v1696, %v1761
  %v1763 = vpop.f32.mrb[0].mxu0
  %1764 = vdwg.mxu0
  %v1765 = vmul.f32 %v1751, 0.5
  %v1766 = vmul.f32 %v1754, 0.5
  %v1767 = vmul.f32 %v1759, 0.5
  %v1768 = vmul.f32 %v1762, 0.5
  %v1769 = vtanh.pop %v1765
  %v1770 = vtanh.pop %v1766
  %v1771 = vtanh.pop %v1767
  %v1772 = vtanh.pop %v1768
  %v1773 = vmul.f32 %v1769, 0.5
  %v1774 = vmul.f32 %v1770, 0.5
  %v1775 = vmul.f32 %v1771, 0.5
  %v1776 = vmul.f32 %v1772, 0.5
  %v1777 = vadd.f32 %v1773, 0.5
  %v1778 = vadd.f32 %v1774, 0.5
  %v1779 = vadd.f32 %v1775, 0.5
  %v1780 = vadd.f32 %v1776, 0.5
  %v1781 = vmul.f32 %v1751, %v1777
  %v1782 = vmul.f32 %v1754, %v1778
  %v1783 = vmul.f32 %v1759, %v1779
  %v1784 = vmul.f32 %v1762, %v1780
  %v1785 = vpack.c.bf16 %v1782, %v1781
  %v1786 = vpack.c.bf16 %v1784, %v1783
  %1787 = vrot.lane.b32.xlu0 %v1706, 96
  %v1788 = vpop.permute.xlu0 %1787
  %1789 = vrot.lane.b32.xlu0 %v1707, 96
  %v1790 = vpop.permute.xlu0 %1789
  %v1794 = vsel %vm435, %v1785, 0
  %v1797 = vsel %vm435, %v1786, 0
  %1799 = vmatprep.subr.bf16.mxu0 0
  %1800 = vmatpush1.bf16.msra.mxu0 %v1788
  %1801 = vmatprep.subr.bf16.mxu0 0
  %1802 = vmatpush1.bf16.msra.mxu0 %v1790
  %1803 = vmatprep.subr.bf16.mxu0 0
  %1804 = vmatpush1.bf16.msra.mxu0 0
  %1805 = vmatprep.subr.bf16.mxu0 0
  %1806 = vmatpush1.bf16.msra.mxu0 0
  %1807 = vmatprep.subr.bf16.mxu0 0
  %1808 = vmatpush1.bf16.msra.mxu0 0
  %1809 = vmatprep.subr.bf16.mxu0 0
  %1810 = vmatpush1.bf16.msra.mxu0 0
  %1811 = vmatprep.subr.bf16.mxu0 0
  %1812 = vmatpush1.bf16.msra.mxu0 0
  %1813 = vmatprep.subr.bf16.mxu0 0
  %1814 = vmatpush1.bf16.msra.mxu0 0
  %1815 = vmatprep.subr.bf16.mxu0 0
  %1816 = vmatpush1.bf16.msra.mxu0 0
  %1817 = vmatprep.subr.bf16.mxu0 0
  %1818 = vmatpush1.bf16.msra.mxu0 0
  %1819 = vmatprep.subr.bf16.mxu0 0
  %1820 = vmatpush1.bf16.msra.mxu0 0
  %1821 = vmatprep.subr.bf16.mxu0 0
  %1822 = vmatpush1.bf16.msra.mxu0 0
  %1823 = vmatprep.subr.bf16.mxu0 0
  %1824 = vmatpush1.bf16.msra.mxu0 0
  %1825 = vmatprep.subr.bf16.mxu0 0
  %1826 = vmatpush1.bf16.msra.mxu0 0
  %1827 = vmatprep.subr.bf16.mxu0 0
  %1828 = vmatpush1.bf16.msra.mxu0 0
  %1829 = vmatprep.subr.bf16.mxu0 0
  %1830 = vmatpush1.bf16.msra.mxu0 0
  %1831 = vmatprep.mubr.bf16.mxu0 0
  %1832 = vmatmul.mubr.bf16.gmra.mrb[0].mxu0 %v1794
  %v1833 = vpop.f32.mrb[0].mxu0
  %v1834 = vadd.f32 0.0, %v1833
  %v1835 = vpop.f32.mrb[0].mxu0
  %v1836 = vpop.f32.mrb[0].mxu0
  %v1837 = vadd.f32 0.0, %v1836
  %v1838 = vpop.f32.mrb[0].mxu0
  %1839 = vmatprep.mubr.bf16.mxu0 0
  %1840 = vmatmul.mubr.bf16.gmra.mrb[0].mxu0 %v1797
  %v1841 = vpop.f32.mrb[0].mxu0
  %v1842 = vadd.f32 0.0, %v1841
  %v1843 = vpop.f32.mrb[0].mxu0
  %v1844 = vpop.f32.mrb[0].mxu0
  %v1845 = vadd.f32 0.0, %v1844
  %v1846 = vpop.f32.mrb[0].mxu0
  %1847 = vdwg.mxu0
  %v1848 = vtanh.pop %v1834
  %v1849 = vtanh.pop %v1837
  %v1850 = vtanh.pop %v1842
  %v1851 = vtanh.pop %v1845
  %1853 = vset.pattern.permute.xlu0 0
  %1854 = vperm.xlu0 %1853, %v1848
  %v1855 = vpop.permute.xlu0 %1854
  %1858 = vset.pattern.permute.xlu0 0
  %1859 = vperm.xlu0 %1858, %v1849
  %v1860 = vpop.permute.xlu0 %1859
  %1863 = vset.pattern.permute.xlu0 0
  %1864 = vperm.xlu0 %1863, %v1850
  %v1865 = vpop.permute.xlu0 %1864
  %1868 = vset.pattern.permute.xlu0 0
  %1869 = vperm.xlu0 %1868, %v1851
  %v1870 = vpop.permute.xlu0 %1869
  %v1872 = vmul.f32 %v290, %v1855
  %v1873 = vmul.f32 %v292, %v1860
  %v1874 = vmul.f32 %v294, %v1865
  %v1875 = vmul.f32 %v296, %v1870
  %1876 = vxpose.xlu0.b32.start [1/16] %v54, 128
  %1877 = vxpose.xlu0.b32.cont [2/16] %v55, 128
  %1878 = vxpose.xlu0.b32.cont [3/16] %v56, 128
  %1879 = vxpose.xlu0.b32.cont [4/16] %v57, 128
  %1880 = vxpose.xlu0.b32.cont [5/16] 0.0, 128
  %1881 = vxpose.xlu0.b32.cont [6/16] 0.0, 128
  %1882 = vxpose.xlu0.b32.cont [7/16] 0.0, 128
  %1883 = vxpose.xlu0.b32.cont [8/16] 0.0, 128
  %1884 = vxpose.xlu0.b32.cont [9/16] 0.0, 128
  %1885 = vxpose.xlu0.b32.cont [10/16] 0.0, 128
  %1886 = vxpose.xlu0.b32.cont [11/16] 0.0, 128
  %1887 = vxpose.xlu0.b32.cont [12/16] 0.0, 128
  %1888 = vxpose.xlu0.b32.cont [13/16] 0.0, 128
  %1889 = vxpose.xlu0.b32.cont [14/16] 0.0, 128
  %1890 = vxpose.xlu0.b32.cont [15/16] 0.0, 128
  %1891 = vxpose.xlu0.b32.end [16/16] 0.0, 128
  %v1892 = vpop.trf.xlu0
  %v1893 = vpop.trf.xlu0
  %v1894 = vpop.trf.xlu0
  %v1895 = vpop.trf.xlu0
  %v1896 = vpop.trf.xlu0
  %v1897 = vpop.trf.xlu0
  %v1898 = vpop.trf.xlu0
  %v1899 = vpop.trf.xlu0
  %v1900 = vpop.trf.xlu0
  %v1901 = vpop.trf.xlu0
  %v1902 = vpop.trf.xlu0
  %v1903 = vpop.trf.xlu0
  %v1904 = vpop.trf.xlu0
  %v1905 = vpop.trf.xlu0
  %v1906 = vpop.trf.xlu0
  %v1907 = vpop.trf.xlu0
  %v1909 = vsel %vm435, %v1892, 0
  %v1912 = vsel %vm435, %v1893, 0
  %1914 = vmatprep.subr.mxu0 0.0
  %1915 = vmatpush1.msra.mxu0 %v1872
  %1916 = vmatprep.subr.mxu0 0.0
  %1917 = vmatpush1.msra.mxu0 %v1873
  %1918 = vmatprep.subr.mxu0 0.0
  %1919 = vmatpush1.msra.mxu0 %v1874
  %1920 = vmatprep.subr.mxu0 0.0
  %1921 = vmatpush1.msra.mxu0 %v1875
  %1922 = vmatprep.subr.mxu0 0.0
  %1923 = vmatpush1.msra.mxu0 0.0
  %1924 = vmatprep.subr.mxu0 0.0
  %1925 = vmatpush1.msra.mxu0 0.0
  %1926 = vmatprep.subr.mxu0 0.0
  %1927 = vmatpush1.msra.mxu0 0.0
  %1928 = vmatprep.subr.mxu0 0.0
  %1929 = vmatpush1.msra.mxu0 0.0
  %1930 = vmatprep.subr.mxu0 0.0
  %1931 = vmatpush1.msra.mxu0 0.0
  %1932 = vmatprep.subr.mxu0 0.0
  %1933 = vmatpush1.msra.mxu0 0.0
  %1934 = vmatprep.subr.mxu0 0.0
  %1935 = vmatpush1.msra.mxu0 0.0
  %1936 = vmatprep.subr.mxu0 0.0
  %1937 = vmatpush1.msra.mxu0 0.0
  %1938 = vmatprep.subr.mxu0 0.0
  %1939 = vmatpush1.msra.mxu0 0.0
  %1940 = vmatprep.subr.mxu0 0.0
  %1941 = vmatpush1.msra.mxu0 0.0
  %1942 = vmatprep.subr.mxu0 0.0
  %1943 = vmatpush1.msra.mxu0 0.0
  %1944 = vmatprep.subr.mxu0 0.0
  %1945 = vmatpush1.msra.mxu0 0.0
  %1946 = vmatprep.subr.mxu0 0.0
  %1947 = vmatpush1.msra.mxu0 0.0
  %1948 = vmatprep.subr.mxu0 0.0
  %1949 = vmatpush1.msra.mxu0 0.0
  %1950 = vmatprep.subr.mxu0 0.0
  %1951 = vmatpush1.msra.mxu0 0.0
  %1952 = vmatprep.subr.mxu0 0.0
  %1953 = vmatpush1.msra.mxu0 0.0
  %1954 = vmatprep.subr.mxu0 0.0
  %1955 = vmatpush1.msra.mxu0 0.0
  %1956 = vmatprep.subr.mxu0 0.0
  %1957 = vmatpush1.msra.mxu0 0.0
  %1958 = vmatprep.subr.mxu0 0.0
  %1959 = vmatpush1.msra.mxu0 0.0
  %1960 = vmatprep.subr.mxu0 0.0
  %1961 = vmatpush1.msra.mxu0 0.0
  %1962 = vmatprep.subr.mxu0 0.0
  %1963 = vmatpush1.msra.mxu0 0.0
  %1964 = vmatprep.subr.mxu0 0.0
  %1965 = vmatpush1.msra.mxu0 0.0
  %1966 = vmatprep.subr.mxu0 0.0
  %1967 = vmatpush1.msra.mxu0 0.0
  %1968 = vmatprep.subr.mxu0 0.0
  %1969 = vmatpush1.msra.mxu0 0.0
  %1970 = vmatprep.subr.mxu0 0.0
  %1971 = vmatpush1.msra.mxu0 0.0
  %1972 = vmatprep.subr.mxu0 0.0
  %1973 = vmatpush1.msra.mxu0 0.0
  %1974 = vmatprep.subr.mxu0 0.0
  %1975 = vmatpush1.msra.mxu0 0.0
  %1976 = vmatprep.subr.mxu0 0.0
  %1977 = vmatpush1.msra.mxu0 0.0
  %1978 = vmatprep.mubr.f32.mxu0 0.0
  %1979 = vmatmul.mubr.f32.gmra.mrb[0].mxu0 %v1909
  %v1980 = vpop.f32.mrb[0].mxu0
  %v1981 = vadd.f32 0.0, %v1980
  %v1982 = vpop.f32.mrb[0].mxu0
  %1983 = vmatprep.mubr.f32.mxu0 0.0
  %1984 = vmatmul.mubr.f32.gmra.mrb[0].mxu0 %v1912
  %v1985 = vpop.f32.mrb[0].mxu0
  %v1986 = vadd.f32 0.0, %v1985
  %v1987 = vpop.f32.mrb[0].mxu0
  %1988 = vdwg.mxu0
  %v1989 = vld [vmem:[%s4] sm:$0xff]
  %v1990 = vld [vmem:[%s4 + $0x8] sm:$0xff]
  %1992 = vset.pattern.permute.xlu0 0
  %1993 = vperm.xlu0 %1992, %v1989
  %v1994 = vpop.permute.xlu0 %1993
  %1997 = vset.pattern.permute.xlu0 0
  %1998 = vperm.xlu0 %1997, %v1990
  %v1999 = vpop.permute.xlu0 %1998
  %v2001 = vrcp.pop %v1994
  %v2002 = vmul.f32 %v1981, %v2001
  %v2003 = vrcp.pop %v1999
  %v2004 = vmul.f32 %v1986, %v2003
  %vm2005 = vcmp.gt.f32.partialorder %v2002, %v201
  %vm2006 = vcmp.gt.f32.partialorder %v2004, %v201
  %v2007 = vsub.f32 %v2002, %v211
  %v2008 = vsub.f32 %v2004, %v211
  %v2009 = vsel %vm2005, %v2007, %v2002
  %v2010 = vsel %vm2006, %v2008, %v2004
  %vm2011 = vcmp.lt.f32.partialorder %v2009, %v226
  %vm2012 = vcmp.lt.f32.partialorder %v2010, %v226
  %v2013 = vadd.f32 %v2009, %v211
  %v2014 = vadd.f32 %v2010, %v211
  %v2015 = vsel %vm2011, %v2013, %v2009
  %v2016 = vsel %vm2012, %v2014, %v2010
  %2017 = vst.msk [vmem:[%s12] sm:$0xff] %vm244, %v2015
  %2018 = vst.msk [vmem:[%s12 + $0x8] sm:$0xff] %vm244, %v2016
  // Predicated region
  $region46: #{basic_vae_forward.1} parent=0 // pred_check
    _
  $region47: #{basic_vae_forward.1} parent=0 // pred_check_branch
    %2020 = sbr.rel (0) target = $region49
  $region48: #{basic_vae_forward.1} parent=0 // pred_region
    _
  $region49: #{basic_vae_forward.1} parent=0 // pred_fallthru
    _
  // Predicated region
  $region50: #{basic_vae_forward.1} parent=0 // pred_check
    _
  $region51: #{basic_vae_forward.1} parent=0 // pred_check_branch
    %2022 = sbr.rel (0) target = $region53
  $region52: #{basic_vae_forward.1} parent=0 // pred_region
    _
  $region53: #{basic_vae_forward.1} parent=0 // pred_fallthru
    _
  // Predicated region
  $region54: #{basic_vae_forward.1} parent=0 // pred_check
    _
  $region55: #{basic_vae_forward.1} parent=0 // pred_check_branch
    %2024 = sbr.rel (0) target = $region57
  $region56: #{basic_vae_forward.1} parent=0 // pred_region
    _
  $region57: #{basic_vae_forward.1} parent=0 // pred_fallthru
    _
  // Predicated region
  $region58: #{basic_vae_forward.1} parent=0 // pred_check
    _
  $region59: #{basic_vae_forward.1} parent=0 // pred_check_branch
    %2026 = sbr.rel (0) target = $region61
  $region60: #{basic_vae_forward.1} parent=0 // pred_region
    _
  $region61: #{basic_vae_forward.1} parent=0 // pred_fallthru
    _

</llo_original>
